<compile_context>
chip_gen: v7x
topology: tpu7x:2x2x1
jax: 0.10.0
libtpu: 0.0.40
codegen_flags: <defaults>
</compile_context>

<pallas_src>
import functools

import jax
import jax.numpy as jnp
from jax.experimental import pallas as pl
from jax.experimental.pallas import tpu as pltpu

SOS_Token = 0
EOS_Token = 1


# ------------------------------ fused kernel ---------------------------------

def _gru_fused_gates(gi, gh, h_prev, H):
    """PyTorch GRU cell from fused [r|z|n] gate pre-activations.
    gi, gh: (M, 3H); h_prev: (M, H) or (1, H) broadcast."""
    r = jax.nn.sigmoid(gi[:, 0:H] + gh[:, 0:H])
    z = jax.nn.sigmoid(gi[:, H:2 * H] + gh[:, H:2 * H])
    n = jnp.tanh(gi[:, 2 * H:3 * H] + r * gh[:, 2 * H:3 * H])
    return (1.0 - z) * n + z * h_prev


def decoder_forward_kernel(x_ref, h_ref,
                           wxo_ref, who_ref, bxo_ref, bho_ref,
                           w_o2i_ref, b_o2i_ref,
                           wxi_ref, whi_ref, bxi_ref, bhi_ref,
                           wout_ref, bout_ref, emb_ref,
                           h_outer_ref, h_inner_ref, toks_ref, len_ref):
    """Whole InstructionsDecoder.forward (greedy path) in one kernel.

    x:(1,S)  h:(1,L)
    outer GRU: wxo:(S,3L) who:(L,3L) bxo/bho:(1,3L)          gates = [r|z|n]
    outer2inner: w_o2i:(L,S) b_o2i:(1,S)
    inner GRU: wxi:(E,3S) whi:(S,3S) bxi/bhi:(1,3S)
    out Linear: wout:(S,V) bout:(1,V)      emb:(V,E)
    outputs: h_outer:(1,L), h_inner:(1,S), toks:(max_len,) i32 SMEM, len:(1,) i32 SMEM
    """
    L = h_ref.shape[1]
    S = w_o2i_ref.shape[1]
    V = wout_ref.shape[1]
    max_len = toks_ref.shape[0]

    # ---- outer GRU, single time step (output == new hidden), fused gates ----
    gi_o = jnp.dot(x_ref[...], wxo_ref[...],
                   preferred_element_type=jnp.float32) + bxo_ref[...]
    gh_o = jnp.dot(h_ref[...], who_ref[...],
                   preferred_element_type=jnp.float32) + bho_ref[...]
    h_outer = _gru_fused_gates(gi_o, gh_o, h_ref[...], L)          # (1, L)
    h_outer_ref[...] = h_outer

    # ---- outer2inner Linear + ReLU -> the (constant) inner hidden ----
    single_instr = jnp.maximum(
        jnp.dot(h_outer, w_o2i_ref[...], preferred_element_type=jnp.float32)
        + b_o2i_ref[...], 0.0)                                      # (1, S)

    # ---- batched transition-table precompute ------------------------------
    # Inner hidden is ALWAYS single_instr, so next-token (and the step's new
    # hidden) is a pure function of the current token. Evaluate all V rows once.
    emb_relu = jnp.maximum(emb_ref[...], 0.0)                       # (V, E), F.relu(embedding)
    gi_all = jnp.dot(emb_relu, wxi_ref[...],
                     preferred_element_type=jnp.float32) + bxi_ref[...]   # (V, 3S)
    # Loop-invariant hidden projection, hoisted (was 1 matmul per token in v1).
    gh_in = jnp.dot(single_instr, whi_ref[...],
                    preferred_element_type=jnp.float32) + bhi_ref[...]    # (1, 3S)
    h_all = _gru_fused_gates(gi_all, gh_in, single_instr, S)        # (V, S)

    # Greedy token = argmax(logits) (== argmax(log_softmax)); ties -> lowest
    # index like torch.topk(1).
    logits_all = jnp.dot(h_all, wout_ref[...],
                         preferred_element_type=jnp.float32) + bout_ref[...]  # (V, V)
    col_iota = jax.lax.broadcasted_iota(jnp.int32, (V, V), 1)
    is_max = logits_all >= jnp.max(logits_all, axis=1, keepdims=True)
    next_tok = jnp.min(jnp.where(is_max, col_iota, jnp.int32(V)),
                       axis=1, keepdims=True)                       # (V, 1) i32

    row_iota = jax.lax.broadcasted_iota(jnp.int32, (V, 1), 0)

    toks_ref[0] = jnp.int32(SOS_Token)

    # ---- greedy decode: pure table walk, fully unrolled (static max_len) ----
    tok = jnp.int32(SOS_Token)          # token fed into the next step
    done = jnp.array(False)
    last_fed = jnp.int32(SOS_Token)     # token fed into the last *executed* step
    length = jnp.int32(1)
    for i in range(1, max_len):
        # next_tok[tok]: exactly one row of row_iota matches -> masked sum.
        new_tok = jnp.sum(
            jnp.where(row_iota == tok, next_tok, jnp.int32(0))).astype(jnp.int32)
        # Post-EOS slots stay 0 (== SOS); the host strictly slices toks[:length]
        # and never reads them.
        toks_ref[i] = jnp.where(done, jnp.int32(0), new_tok)
        last_fed = jnp.where(done, last_fed, tok)
        length = jnp.where(done, length, length + jnp.int32(1))
        new_done = jnp.logical_or(done, new_tok == EOS_Token)
        tok = jnp.where(done, tok, new_tok)
        done = new_done

    # h_inner = h_all[last_fed]  (hidden produced by the last executed step).
    one_hot = (jax.lax.broadcasted_iota(jnp.int32, (1, V), 1)
               == last_fed).astype(jnp.float32)                     # (1, V)
    h_inner_ref[...] = jnp.dot(one_hot, h_all,
                               preferred_element_type=jnp.float32)  # (1, S)
    len_ref[0] = length


# ---------------------------- pallas_call wrapper -----------------------------

@functools.partial(jax.jit, static_argnames=("max_len",))
def decoder_forward(x, h, params, max_len):
    L = h.shape[1]
    S = params["w_o2i"].shape[1]
    V = params["w_out"].shape[1]

    operands = (x, h,
                params["wx_o"], params["wh_o"], params["bx_o"], params["bh_o"],
                params["w_o2i"], params["b_o2i"],
                params["wx_i"], params["wh_i"], params["bx_i"], params["bh_i"],
                params["w_out"], params["b_out"], params["emb"])

    # Explicit VMEM budget (v7x: 64 MiB physical): resident weights + the
    # batched tables (gi_all V*3S, h_all V*S, logits/is_max/iota ~ 3*V*V), f32.
    in_bytes = sum(int(a.size) * a.dtype.itemsize for a in operands)
    table_bytes = 4 * (V * 3 * S + V * S + 3 * V * V)
    vmem_limit = int(min(64 * 1024 * 1024,
                         max(8 * 1024 * 1024, 2 * (in_bytes + table_bytes))))

    def vmem():
        return pl.BlockSpec(memory_space=pltpu.MemorySpace.VMEM)

    def smem():
        return pl.BlockSpec(memory_space=pltpu.MemorySpace.SMEM)

    return pl.pallas_call(
        decoder_forward_kernel,
        out_shape=(
            jax.ShapeDtypeStruct((1, L), jnp.float32),      # new outer hidden
            jax.ShapeDtypeStruct((1, S), jnp.float32),      # inner hidden @ last executed step
            jax.ShapeDtypeStruct((max_len,), jnp.int32),    # decoded token ids
            jax.ShapeDtypeStruct((1,), jnp.int32),          # decoded length
        ),
        in_specs=[vmem() for _ in range(15)],
        out_specs=(vmem(), vmem(), smem(), smem()),
        compiler_params=pltpu.CompilerParams(vmem_limit_bytes=vmem_limit),
    )(*operands)


# ------------------------------ parameter setup -------------------------------

def _uniform(key, shape, bound):
    return jax.random.uniform(key, shape, jnp.float32, minval=-bound, maxval=bound)


def _make_gru_params(key, input_dim, hidden_dim):
    """PyTorch nn.GRU-style init; fused-gate layout [r|z|n] along last axis.
    wx:(I,3H)  wh:(H,3H)  bx/bh:(1,3H)."""
    bound = 1.0 / float(hidden_dim) ** 0.5
    k1, k2, k3, k4 = jax.random.split(key, 4)
    return (_uniform(k1, (input_dim, 3 * hidden_dim), bound),
            _uniform(k2, (hidden_dim, 3 * hidden_dim), bound),
            _uniform(k3, (1, 3 * hidden_dim), bound),
            _uniform(k4, (1, 3 * hidden_dim), bound))


def _make_linear_params(key, in_dim, out_dim):
    bound = 1.0 / float(in_dim) ** 0.5
    k1, k2 = jax.random.split(key)
    return _uniform(k1, (in_dim, out_dim), bound), _uniform(k2, (1, out_dim), bound)


class InstructionsDecoderPallas:
    """JAX/Pallas re-implementation of InstructionsDecoder (inference path:
    targets=None, ingr_outputs=None)."""

    def __init__(self, key, word_embedding_dim, single_instr_hidden_dim,
                 instr_list_hidden_dim, vocab_size, max_instr_length=20):
        # max_instr_length == 1 would never execute a decode step (the PyTorch
        # loop would leave instr_hidden undefined); require >= 2.
        assert max_instr_length >= 2
        self.E = word_embedding_dim
        self.S = single_instr_hidden_dim
        self.L = instr_list_hidden_dim
        self.V = vocab_size
        self.max_instr_length = max_instr_length

        keys = jax.random.split(key, 5)
        wx_o, wh_o, bx_o, bh_o = _make_gru_params(keys[1], self.S, self.L)
        w_o2i, b_o2i = _make_linear_params(keys[2], self.L, self.S)
        wx_i, wh_i, bx_i, bh_i = _make_gru_params(keys[3], self.E, self.S)
        w_out, b_out = _make_linear_params(keys[4], self.S, self.V)
        self.params = {
            "emb": jax.random.normal(keys[0], (self.V, self.E), jnp.float32),
            "wx_o": wx_o, "wh_o": wh_o, "bx_o": bx_o, "bh_o": bh_o,
            "w_o2i": w_o2i, "b_o2i": b_o2i,
            "wx_i": wx_i, "wh_i": wh_i, "bx_i": bx_i, "bh_i": bh_i,
            "w_out": w_out, "b_out": b_out,
        }
        # TODO(synk): IngrToInstrAttention class is not defined in the source module,
        # so the `ingr_outputs is not None` branch is not implemented.
        # TODO(synk): teacher-forcing training branch (host `word_loss` callable,
        # targets, python RNG) is not implemented; loss path returns 0.
        # TODO(synk): bf16 weight cast (MXU/DMA win for large vocab) intentionally
        # skipped; weights kept f32 for parity with the PyTorch module.
        # TODO(synk): if many sequences are decoded at once, add a leading batch
        # grid axis with dimension_semantics=("parallel",) to use v7x's 2nd TC.

    def forward(self, inp, hidden, targets=None, ingr_outputs=None):
        """inp: (1, 1, S) float32   hidden: (1, 1, L) float32
        Returns (output (1,1,S), hidden (1,1,L), instruction list[int], loss)."""
        assert targets is None and ingr_outputs is None

        x = inp[0]       # (1, S)
        h = hidden[0]    # (1, L)

        h_outer, h_inner, toks, length = decoder_forward(
            x, h, self.params, self.max_instr_length)

        # Single blocking D2H transfer per forward(); defer further if the
        # caller can consume device arrays instead of Python ints.
        toks_host, len_host = jax.device_get((toks, length))
        n = int(len_host[0])
        instruction = [int(t) for t in toks_host[:n]]

        output = h_inner[None, :, :]        # (1, 1, S) — inner hidden from last executed step
        hidden_out = h_outer[None, :, :]    # (1, 1, L) — new outer GRU hidden
        loss = 0
        return output, hidden_out, instruction, loss


# ----------------------------------- main -------------------------------------

if __name__ == "__main__":
    E = 32    # word_embedding_dim
    S = 32    # single_instr_hidden_dim
    L = 64    # instr_list_hidden_dim
    V = 128   # vocab_size
    MAX_LEN = 8

    root = jax.random.PRNGKey(0)
    k_params, k_in = jax.random.split(root)

    decoder = InstructionsDecoderPallas(
        k_params,
        word_embedding_dim=E,
        single_instr_hidden_dim=S,
        instr_list_hidden_dim=L,
        vocab_size=V,
        max_instr_length=MAX_LEN,
    )

    inp = jax.random.normal(k_in, (1, 1, S), jnp.float32)    # (seq=1, batch=1, S)
    hidden = jnp.zeros((1, 1, L), jnp.float32)                # (1, batch=1, L)

    output, hidden_out, instruction, loss = decoder.forward(inp, hidden)
    jax.block_until_ready(output)
    jax.block_until_ready(hidden_out)

    assert output.shape == (1, 1, S)
    assert hidden_out.shape == (1, 1, L)
    assert instruction[0] == SOS_Token and 2 <= len(instruction) <= MAX_LEN

    print("KERNEL_OK")
</pallas_src>

<mosaic_0001>
module attributes {stable_mosaic.version = 11 : i64} {
  func.func @decoder_forward_kernel(%arg0: memref<1x32xf32, #tpu.memory_space<vmem>>, %arg1: memref<1x64xf32, #tpu.memory_space<vmem>>, %arg2: memref<32x192xf32, #tpu.memory_space<vmem>>, %arg3: memref<64x192xf32, #tpu.memory_space<vmem>>, %arg4: memref<1x192xf32, #tpu.memory_space<vmem>>, %arg5: memref<1x192xf32, #tpu.memory_space<vmem>>, %arg6: memref<64x32xf32, #tpu.memory_space<vmem>>, %arg7: memref<1x32xf32, #tpu.memory_space<vmem>>, %arg8: memref<32x96xf32, #tpu.memory_space<vmem>>, %arg9: memref<32x96xf32, #tpu.memory_space<vmem>>, %arg10: memref<1x96xf32, #tpu.memory_space<vmem>>, %arg11: memref<1x96xf32, #tpu.memory_space<vmem>>, %arg12: memref<32x128xf32, #tpu.memory_space<vmem>>, %arg13: memref<1x128xf32, #tpu.memory_space<vmem>>, %arg14: memref<128x32xf32, #tpu.memory_space<vmem>>, %arg15: memref<1x64xf32, #tpu.memory_space<vmem>>, %arg16: memref<1x32xf32, #tpu.memory_space<vmem>>, %arg17: memref<8xi32, #tpu.memory_space<smem>>, %arg18: memref<1xi32, #tpu.memory_space<smem>>) attributes {dimension_semantics = [], scalar_prefetch = 0 : i64, scratch_operands = 0 : i64, tpu.core_type = #tpu.core_type<tc>} {
    %c0 = arith.constant 0 : index
    %c0_0 = arith.constant 0 : index
    %0 = vector.load %arg0[%c0, %c0_0] : memref<1x32xf32, #tpu.memory_space<vmem>>, vector<1x32xf32>
    %c0_1 = arith.constant 0 : index
    %c0_2 = arith.constant 0 : index
    %1 = vector.load %arg2[%c0_1, %c0_2] : memref<32x192xf32, #tpu.memory_space<vmem>>, vector<32x192xf32>
    %cst = arith.constant dense<0.000000e+00> : vector<1x192xf32>
    %2 = tpu.matmul %0, %1, %cst {dimension_numbers = #tpu.dot_dimension_numbers<[1], [0], [0], [1], [0, 0, 1, 1], [], []>} : vector<1x32xf32>, vector<32x192xf32>, vector<1x192xf32> -> vector<1x192xf32>
    %c0_3 = arith.constant 0 : index
    %c0_4 = arith.constant 0 : index
    %3 = vector.load %arg4[%c0_3, %c0_4] : memref<1x192xf32, #tpu.memory_space<vmem>>, vector<1x192xf32>
    %4 = arith.addf %2, %3 : vector<1x192xf32>
    %c0_5 = arith.constant 0 : index
    %c0_6 = arith.constant 0 : index
    %5 = vector.load %arg1[%c0_5, %c0_6] : memref<1x64xf32, #tpu.memory_space<vmem>>, vector<1x64xf32>
    %c0_7 = arith.constant 0 : index
    %c0_8 = arith.constant 0 : index
    %6 = vector.load %arg3[%c0_7, %c0_8] : memref<64x192xf32, #tpu.memory_space<vmem>>, vector<64x192xf32>
    %cst_9 = arith.constant dense<0.000000e+00> : vector<1x192xf32>
    %7 = tpu.matmul %5, %6, %cst_9 {dimension_numbers = #tpu.dot_dimension_numbers<[1], [0], [0], [1], [0, 0, 1, 1], [], []>} : vector<1x64xf32>, vector<64x192xf32>, vector<1x192xf32> -> vector<1x192xf32>
    %c0_10 = arith.constant 0 : index
    %c0_11 = arith.constant 0 : index
    %8 = vector.load %arg5[%c0_10, %c0_11] : memref<1x192xf32, #tpu.memory_space<vmem>>, vector<1x192xf32>
    %9 = arith.addf %7, %8 : vector<1x192xf32>
    %c0_12 = arith.constant 0 : index
    %c0_13 = arith.constant 0 : index
    %10 = vector.load %arg1[%c0_12, %c0_13] : memref<1x64xf32, #tpu.memory_space<vmem>>, vector<1x64xf32>
    %11 = vector.extract_strided_slice %4 {offsets = [0, 0], sizes = [1, 64], strides = [1, 1]} : vector<1x192xf32> to vector<1x64xf32>
    %12 = vector.extract_strided_slice %9 {offsets = [0, 0], sizes = [1, 64], strides = [1, 1]} : vector<1x192xf32> to vector<1x64xf32>
    %13 = arith.addf %11, %12 : vector<1x64xf32>
    %14 = arith.negf %13 : vector<1x64xf32>
    %15 = math.exp %14 : vector<1x64xf32>
    %cst_14 = arith.constant 1.000000e+00 : f32
    %16 = vector.broadcast %cst_14 : f32 to vector<1x64xf32>
    %17 = arith.addf %16, %15 : vector<1x64xf32>
    %18 = arith.divf %16, %17 : vector<1x64xf32>
    %19 = vector.extract_strided_slice %4 {offsets = [0, 64], sizes = [1, 64], strides = [1, 1]} : vector<1x192xf32> to vector<1x64xf32>
    %20 = vector.extract_strided_slice %9 {offsets = [0, 64], sizes = [1, 64], strides = [1, 1]} : vector<1x192xf32> to vector<1x64xf32>
    %21 = arith.addf %19, %20 : vector<1x64xf32>
    %22 = arith.negf %21 : vector<1x64xf32>
    %23 = math.exp %22 : vector<1x64xf32>
    %cst_15 = arith.constant 1.000000e+00 : f32
    %24 = vector.broadcast %cst_15 : f32 to vector<1x64xf32>
    %25 = arith.addf %24, %23 : vector<1x64xf32>
    %26 = arith.divf %24, %25 : vector<1x64xf32>
    %27 = vector.extract_strided_slice %4 {offsets = [0, 128], sizes = [1, 64], strides = [1, 1]} : vector<1x192xf32> to vector<1x64xf32>
    %28 = vector.extract_strided_slice %9 {offsets = [0, 128], sizes = [1, 64], strides = [1, 1]} : vector<1x192xf32> to vector<1x64xf32>
    %29 = arith.mulf %18, %28 : vector<1x64xf32>
    %30 = arith.addf %27, %29 : vector<1x64xf32>
    %31 = math.tanh %30 : vector<1x64xf32>
    %cst_16 = arith.constant 1.000000e+00 : f32
    %32 = vector.broadcast %cst_16 : f32 to vector<1x64xf32>
    %33 = arith.subf %32, %26 : vector<1x64xf32>
    %34 = arith.mulf %33, %31 : vector<1x64xf32>
    %35 = arith.mulf %26, %10 : vector<1x64xf32>
    %36 = arith.addf %34, %35 : vector<1x64xf32>
    %c0_17 = arith.constant 0 : index
    %c0_18 = arith.constant 0 : index
    %37 = vector.load %arg15[%c0_17, %c0_18] : memref<1x64xf32, #tpu.memory_space<vmem>>, vector<1x64xf32>
    tpu.vector_store %arg15[%c0_17, %c0_18], %36 {strides = array<i32>} : memref<1x64xf32, #tpu.memory_space<vmem>>, vector<1x64xf32>,
    %c0_19 = arith.constant 0 : index
    %c0_20 = arith.constant 0 : index
    %38 = vector.load %arg6[%c0_19, %c0_20] : memref<64x32xf32, #tpu.memory_space<vmem>>, vector<64x32xf32>
    %cst_21 = arith.constant dense<0.000000e+00> : vector<1x32xf32>
    %39 = tpu.matmul %36, %38, %cst_21 {dimension_numbers = #tpu.dot_dimension_numbers<[1], [0], [0], [1], [0, 0, 1, 1], [], []>} : vector<1x64xf32>, vector<64x32xf32>, vector<1x32xf32> -> vector<1x32xf32>
    %c0_22 = arith.constant 0 : index
    %c0_23 = arith.constant 0 : index
    %40 = vector.load %arg7[%c0_22, %c0_23] : memref<1x32xf32, #tpu.memory_space<vmem>>, vector<1x32xf32>
    %41 = arith.addf %39, %40 : vector<1x32xf32>
    %cst_24 = arith.constant 0.000000e+00 : f32
    %42 = vector.broadcast %cst_24 : f32 to vector<1x32xf32>
    %43 = arith.maximumf %41, %42 : vector<1x32xf32>
    %c0_25 = arith.constant 0 : index
    %c0_26 = arith.constant 0 : index
    %44 = vector.load %arg14[%c0_25, %c0_26] : memref<128x32xf32, #tpu.memory_space<vmem>>, vector<128x32xf32>
    %cst_27 = arith.constant 0.000000e+00 : f32
    %45 = vector.broadcast %cst_27 : f32 to vector<128x32xf32>
    %46 = arith.maximumf %44, %45 : vector<128x32xf32>
    %c0_28 = arith.constant 0 : index
    %c0_29 = arith.constant 0 : index
    %47 = vector.load %arg8[%c0_28, %c0_29] : memref<32x96xf32, #tpu.memory_space<vmem>>, vector<32x96xf32>
    %cst_30 = arith.constant dense<0.000000e+00> : vector<128x96xf32>
    %48 = tpu.matmul %46, %47, %cst_30 {dimension_numbers = #tpu.dot_dimension_numbers<[1], [0], [0], [1], [0, 0, 1, 1], [], []>} : vector<128x32xf32>, vector<32x96xf32>, vector<128x96xf32> -> vector<128x96xf32>
    %c0_31 = arith.constant 0 : index
    %c0_32 = arith.constant 0 : index
    %49 = vector.load %arg10[%c0_31, %c0_32] : memref<1x96xf32, #tpu.memory_space<vmem>>, vector<1x96xf32>
    %50 = vector.broadcast %49 : vector<1x96xf32> to vector<128x96xf32>
    %51 = arith.addf %48, %50 : vector<128x96xf32>
    %c0_33 = arith.constant 0 : index
    %c0_34 = arith.constant 0 : index
    %52 = vector.load %arg9[%c0_33, %c0_34] : memref<32x96xf32, #tpu.memory_space<vmem>>, vector<32x96xf32>
    %cst_35 = arith.constant dense<0.000000e+00> : vector<1x96xf32>
    %53 = tpu.matmul %43, %52, %cst_35 {dimension_numbers = #tpu.dot_dimension_numbers<[1], [0], [0], [1], [0, 0, 1, 1], [], []>} : vector<1x32xf32>, vector<32x96xf32>, vector<1x96xf32> -> vector<1x96xf32>
    %c0_36 = arith.constant 0 : index
    %c0_37 = arith.constant 0 : index
    %54 = vector.load %arg11[%c0_36, %c0_37] : memref<1x96xf32, #tpu.memory_space<vmem>>, vector<1x96xf32>
    %55 = arith.addf %53, %54 : vector<1x96xf32>
    %56 = vector.extract_strided_slice %51 {offsets = [0, 0], sizes = [128, 32], strides = [1, 1]} : vector<128x96xf32> to vector<128x32xf32>
    %57 = vector.extract_strided_slice %55 {offsets = [0, 0], sizes = [1, 32], strides = [1, 1]} : vector<1x96xf32> to vector<1x32xf32>
    %58 = vector.broadcast %57 : vector<1x32xf32> to vector<128x32xf32>
    %59 = arith.addf %56, %58 : vector<128x32xf32>
    %60 = arith.negf %59 : vector<128x32xf32>
    %61 = math.exp %60 : vector<128x32xf32>
    %cst_38 = arith.constant 1.000000e+00 : f32
    %62 = vector.broadcast %cst_38 : f32 to vector<128x32xf32>
    %63 = arith.addf %62, %61 : vector<128x32xf32>
    %64 = arith.divf %62, %63 : vector<128x32xf32>
    %65 = vector.extract_strided_slice %51 {offsets = [0, 32], sizes = [128, 32], strides = [1, 1]} : vector<128x96xf32> to vector<128x32xf32>
    %66 = vector.extract_strided_slice %55 {offsets = [0, 32], sizes = [1, 32], strides = [1, 1]} : vector<1x96xf32> to vector<1x32xf32>
    %67 = vector.broadcast %66 : vector<1x32xf32> to vector<128x32xf32>
    %68 = arith.addf %65, %67 : vector<128x32xf32>
    %69 = arith.negf %68 : vector<128x32xf32>
    %70 = math.exp %69 : vector<128x32xf32>
    %cst_39 = arith.constant 1.000000e+00 : f32
    %71 = vector.broadcast %cst_39 : f32 to vector<128x32xf32>
    %72 = arith.addf %71, %70 : vector<128x32xf32>
    %73 = arith.divf %71, %72 : vector<128x32xf32>
    %74 = vector.extract_strided_slice %51 {offsets = [0, 64], sizes = [128, 32], strides = [1, 1]} : vector<128x96xf32> to vector<128x32xf32>
    %75 = vector.extract_strided_slice %55 {offsets = [0, 64], sizes = [1, 32], strides = [1, 1]} : vector<1x96xf32> to vector<1x32xf32>
    %76 = vector.broadcast %75 : vector<1x32xf32> to vector<128x32xf32>
    %77 = arith.mulf %64, %76 : vector<128x32xf32>
    %78 = arith.addf %74, %77 : vector<128x32xf32>
    %79 = math.tanh %78 : vector<128x32xf32>
    %cst_40 = arith.constant 1.000000e+00 : f32
    %80 = vector.broadcast %cst_40 : f32 to vector<128x32xf32>
    %81 = arith.subf %80, %73 : vector<128x32xf32>
    %82 = arith.mulf %81, %79 : vector<128x32xf32>
    %83 = vector.broadcast %43 : vector<1x32xf32> to vector<128x32xf32>
    %84 = arith.mulf %73, %83 : vector<128x32xf32>
    %85 = arith.addf %82, %84 : vector<128x32xf32>
    %c0_41 = arith.constant 0 : index
    %c0_42 = arith.constant 0 : index
    %86 = vector.load %arg12[%c0_41, %c0_42] : memref<32x128xf32, #tpu.memory_space<vmem>>, vector<32x128xf32>
    %cst_43 = arith.constant dense<0.000000e+00> : vector<128x128xf32>
    %87 = tpu.matmul %85, %86, %cst_43 {dimension_numbers = #tpu.dot_dimension_numbers<[1], [0], [0], [1], [0, 0, 1, 1], [], []>} : vector<128x32xf32>, vector<32x128xf32>, vector<128x128xf32> -> vector<128x128xf32>
    %c0_44 = arith.constant 0 : index
    %c0_45 = arith.constant 0 : index
    %88 = vector.load %arg13[%c0_44, %c0_45] : memref<1x128xf32, #tpu.memory_space<vmem>>, vector<1x128xf32>
    %89 = vector.broadcast %88 : vector<1x128xf32> to vector<128x128xf32>
    %90 = arith.addf %87, %89 : vector<128x128xf32>
    %91 = tpu.iota {dimensions = array<i32: 1>} : vector<128x128xi32>
    %cst_46 = arith.constant dense<0xFF800000> : vector<128xf32>
    %92 = vector.multi_reduction <maximumf>, %90, %cst_46 [1] : vector<128x128xf32> to vector<128xf32>
    %93 = vector.shape_cast %92 : vector<128xf32> to vector<128x1xf32>
    %94 = vector.broadcast %93 : vector<128x1xf32> to vector<128x128xf32>
    %95 = arith.cmpf oge, %90, %94 : vector<128x128xf32>
    %c128_i32 = arith.constant 128 : i32
    %96 = vector.broadcast %c128_i32 : i32 to vector<128x128xi32>
    %97 = arith.select %95, %91, %96 : vector<128x128xi1>, vector<128x128xi32>
    %cst_47 = arith.constant dense<2147483647> : vector<128xi32>
    %98 = vector.multi_reduction <minsi>, %97, %cst_47 [1] : vector<128x128xi32> to vector<128xi32>
    %99 = vector.shape_cast %98 : vector<128xi32> to vector<128x1xi32>
    %100 = tpu.iota {dimensions = array<i32: 0>} : vector<128x1xi32>
    %c0_i32 = arith.constant 0 : i32
    %c0_48 = arith.constant 0 : index
    %101 = memref.load %arg17[%c0_48] : memref<8xi32, #tpu.memory_space<smem>>
    memref.store %c0_i32, %arg17[%c0_48] : memref<8xi32, #tpu.memory_space<smem>>
    %c0_i32_49 = arith.constant 0 : i32
    %102 = vector.broadcast %c0_i32_49 : i32 to vector<128x1xi32>
    %103 = arith.cmpi eq, %100, %102 : vector<128x1xi32>
    %c0_i32_50 = arith.constant 0 : i32
    %104 = vector.broadcast %c0_i32_50 : i32 to vector<128x1xi32>
    %105 = arith.select %103, %99, %104 : vector<128x1xi1>, vector<128x1xi32>
    %106 = vector.shape_cast %105 : vector<128x1xi32> to vector<1x128x1xi32>
    %cst_51 = arith.constant dense<0> : vector<1xi32>
    %107 = vector.multi_reduction <add>, %106, %cst_51 [1, 2] : vector<1x128x1xi32> to vector<1xi32>
    %108 = vector.shape_cast %107 : vector<1xi32> to vector<1x1x1xi32>
    %109 = vector.extract %108[0, 0, 0] : i32 from vector<1x1x1xi32>
    %false = arith.constant false
    %c0_i32_52 = arith.constant 0 : i32
    %110 = arith.select %false, %c0_i32_52, %109 : i32
    %c1 = arith.constant 1 : index
    %111 = memref.load %arg17[%c1] : memref<8xi32, #tpu.memory_space<smem>>
    memref.store %110, %arg17[%c1] : memref<8xi32, #tpu.memory_space<smem>>
    %false_53 = arith.constant false
    %c0_i32_54 = arith.constant 0 : i32
    %c0_i32_55 = arith.constant 0 : i32
    %112 = arith.select %false_53, %c0_i32_54, %c0_i32_55 : i32
    %c1_i32 = arith.constant 1 : i32
    %c1_i32_56 = arith.constant 1 : i32
    %113 = arith.addi %c1_i32, %c1_i32_56 : i32
    %false_57 = arith.constant false
    %c1_i32_58 = arith.constant 1 : i32
    %114 = arith.select %false_57, %c1_i32_58, %113 : i32
    %c1_i32_59 = arith.constant 1 : i32
    %115 = arith.cmpi eq, %109, %c1_i32_59 : i32
    %false_60 = arith.constant false
    %116 = arith.ori %false_60, %115 : i1
    %false_61 = arith.constant false
    %c0_i32_62 = arith.constant 0 : i32
    %117 = arith.select %false_61, %c0_i32_62, %109 : i32
    %118 = vector.broadcast %117 : i32 to vector<128x1xi32>
    %119 = arith.cmpi eq, %100, %118 : vector<128x1xi32>
    %c0_i32_63 = arith.constant 0 : i32
    %120 = vector.broadcast %c0_i32_63 : i32 to vector<128x1xi32>
    %121 = arith.select %119, %99, %120 : vector<128x1xi1>, vector<128x1xi32>
    %122 = vector.shape_cast %121 : vector<128x1xi32> to vector<1x128x1xi32>
    %cst_64 = arith.constant dense<0> : vector<1xi32>
    %123 = vector.multi_reduction <add>, %122, %cst_64 [1, 2] : vector<1x128x1xi32> to vector<1xi32>
    %124 = vector.shape_cast %123 : vector<1xi32> to vector<1x1x1xi32>
    %125 = vector.extract %124[0, 0, 0] : i32 from vector<1x1x1xi32>
    %c0_i32_65 = arith.constant 0 : i32
    %126 = arith.select %116, %c0_i32_65, %125 : i32
    %c2 = arith.constant 2 : index
    %127 = memref.load %arg17[%c2] : memref<8xi32, #tpu.memory_space<smem>>
    memref.store %126, %arg17[%c2] : memref<8xi32, #tpu.memory_space<smem>>
    %128 = arith.select %116, %112, %117 : i32
    %c1_i32_66 = arith.constant 1 : i32
    %129 = arith.addi %114, %c1_i32_66 : i32
    %130 = arith.select %116, %114, %129 : i32
    %c1_i32_67 = arith.constant 1 : i32
    %131 = arith.cmpi eq, %125, %c1_i32_67 : i32
    %132 = arith.ori %116, %131 : i1
    %133 = arith.select %116, %117, %125 : i32
    %134 = vector.broadcast %133 : i32 to vector<128x1xi32>
    %135 = arith.cmpi eq, %100, %134 : vector<128x1xi32>
    %c0_i32_68 = arith.constant 0 : i32
    %136 = vector.broadcast %c0_i32_68 : i32 to vector<128x1xi32>
    %137 = arith.select %135, %99, %136 : vector<128x1xi1>, vector<128x1xi32>
    %138 = vector.shape_cast %137 : vector<128x1xi32> to vector<1x128x1xi32>
    %cst_69 = arith.constant dense<0> : vector<1xi32>
    %139 = vector.multi_reduction <add>, %138, %cst_69 [1, 2] : vector<1x128x1xi32> to vector<1xi32>
    %140 = vector.shape_cast %139 : vector<1xi32> to vector<1x1x1xi32>
    %141 = vector.extract %140[0, 0, 0] : i32 from vector<1x1x1xi32>
    %c0_i32_70 = arith.constant 0 : i32
    %142 = arith.select %132, %c0_i32_70, %141 : i32
    %c3 = arith.constant 3 : index
    %143 = memref.load %arg17[%c3] : memref<8xi32, #tpu.memory_space<smem>>
    memref.store %142, %arg17[%c3] : memref<8xi32, #tpu.memory_space<smem>>
    %144 = arith.select %132, %128, %133 : i32
    %c1_i32_71 = arith.constant 1 : i32
    %145 = arith.addi %130, %c1_i32_71 : i32
    %146 = arith.select %132, %130, %145 : i32
    %c1_i32_72 = arith.constant 1 : i32
    %147 = arith.cmpi eq, %141, %c1_i32_72 : i32
    %148 = arith.ori %132, %147 : i1
    %149 = arith.select %132, %133, %141 : i32
    %150 = vector.broadcast %149 : i32 to vector<128x1xi32>
    %151 = arith.cmpi eq, %100, %150 : vector<128x1xi32>
    %c0_i32_73 = arith.constant 0 : i32
    %152 = vector.broadcast %c0_i32_73 : i32 to vector<128x1xi32>
    %153 = arith.select %151, %99, %152 : vector<128x1xi1>, vector<128x1xi32>
    %154 = vector.shape_cast %153 : vector<128x1xi32> to vector<1x128x1xi32>
    %cst_74 = arith.constant dense<0> : vector<1xi32>
    %155 = vector.multi_reduction <add>, %154, %cst_74 [1, 2] : vector<1x128x1xi32> to vector<1xi32>
    %156 = vector.shape_cast %155 : vector<1xi32> to vector<1x1x1xi32>
    %157 = vector.extract %156[0, 0, 0] : i32 from vector<1x1x1xi32>
    %c0_i32_75 = arith.constant 0 : i32
    %158 = arith.select %148, %c0_i32_75, %157 : i32
    %c4 = arith.constant 4 : index
    %159 = memref.load %arg17[%c4] : memref<8xi32, #tpu.memory_space<smem>>
    memref.store %158, %arg17[%c4] : memref<8xi32, #tpu.memory_space<smem>>
    %160 = arith.select %148, %144, %149 : i32
    %c1_i32_76 = arith.constant 1 : i32
    %161 = arith.addi %146, %c1_i32_76 : i32
    %162 = arith.select %148, %146, %161 : i32
    %c1_i32_77 = arith.constant 1 : i32
    %163 = arith.cmpi eq, %157, %c1_i32_77 : i32
    %164 = arith.ori %148, %163 : i1
    %165 = arith.select %148, %149, %157 : i32
    %166 = vector.broadcast %165 : i32 to vector<128x1xi32>
    %167 = arith.cmpi eq, %100, %166 : vector<128x1xi32>
    %c0_i32_78 = arith.constant 0 : i32
    %168 = vector.broadcast %c0_i32_78 : i32 to vector<128x1xi32>
    %169 = arith.select %167, %99, %168 : vector<128x1xi1>, vector<128x1xi32>
    %170 = vector.shape_cast %169 : vector<128x1xi32> to vector<1x128x1xi32>
    %cst_79 = arith.constant dense<0> : vector<1xi32>
    %171 = vector.multi_reduction <add>, %170, %cst_79 [1, 2] : vector<1x128x1xi32> to vector<1xi32>
    %172 = vector.shape_cast %171 : vector<1xi32> to vector<1x1x1xi32>
    %173 = vector.extract %172[0, 0, 0] : i32 from vector<1x1x1xi32>
    %c0_i32_80 = arith.constant 0 : i32
    %174 = arith.select %164, %c0_i32_80, %173 : i32
    %c5 = arith.constant 5 : index
    %175 = memref.load %arg17[%c5] : memref<8xi32, #tpu.memory_space<smem>>
    memref.store %174, %arg17[%c5] : memref<8xi32, #tpu.memory_space<smem>>
    %176 = arith.select %164, %160, %165 : i32
    %c1_i32_81 = arith.constant 1 : i32
    %177 = arith.addi %162, %c1_i32_81 : i32
    %178 = arith.select %164, %162, %177 : i32
    %c1_i32_82 = arith.constant 1 : i32
    %179 = arith.cmpi eq, %173, %c1_i32_82 : i32
    %180 = arith.ori %164, %179 : i1
    %181 = arith.select %164, %165, %173 : i32
    %182 = vector.broadcast %181 : i32 to vector<128x1xi32>
    %183 = arith.cmpi eq, %100, %182 : vector<128x1xi32>
    %c0_i32_83 = arith.constant 0 : i32
    %184 = vector.broadcast %c0_i32_83 : i32 to vector<128x1xi32>
    %185 = arith.select %183, %99, %184 : vector<128x1xi1>, vector<128x1xi32>
    %186 = vector.shape_cast %185 : vector<128x1xi32> to vector<1x128x1xi32>
    %cst_84 = arith.constant dense<0> : vector<1xi32>
    %187 = vector.multi_reduction <add>, %186, %cst_84 [1, 2] : vector<1x128x1xi32> to vector<1xi32>
    %188 = vector.shape_cast %187 : vector<1xi32> to vector<1x1x1xi32>
    %189 = vector.extract %188[0, 0, 0] : i32 from vector<1x1x1xi32>
    %c0_i32_85 = arith.constant 0 : i32
    %190 = arith.select %180, %c0_i32_85, %189 : i32
    %c6 = arith.constant 6 : index
    %191 = memref.load %arg17[%c6] : memref<8xi32, #tpu.memory_space<smem>>
    memref.store %190, %arg17[%c6] : memref<8xi32, #tpu.memory_space<smem>>
    %192 = arith.select %180, %176, %181 : i32
    %c1_i32_86 = arith.constant 1 : i32
    %193 = arith.addi %178, %c1_i32_86 : i32
    %194 = arith.select %180, %178, %193 : i32
    %c1_i32_87 = arith.constant 1 : i32
    %195 = arith.cmpi eq, %189, %c1_i32_87 : i32
    %196 = arith.ori %180, %195 : i1
    %197 = arith.select %180, %181, %189 : i32
    %198 = vector.broadcast %197 : i32 to vector<128x1xi32>
    %199 = arith.cmpi eq, %100, %198 : vector<128x1xi32>
    %c0_i32_88 = arith.constant 0 : i32
    %200 = vector.broadcast %c0_i32_88 : i32 to vector<128x1xi32>
    %201 = arith.select %199, %99, %200 : vector<128x1xi1>, vector<128x1xi32>
    %202 = vector.shape_cast %201 : vector<128x1xi32> to vector<1x128x1xi32>
    %cst_89 = arith.constant dense<0> : vector<1xi32>
    %203 = vector.multi_reduction <add>, %202, %cst_89 [1, 2] : vector<1x128x1xi32> to vector<1xi32>
    %204 = vector.shape_cast %203 : vector<1xi32> to vector<1x1x1xi32>
    %205 = vector.extract %204[0, 0, 0] : i32 from vector<1x1x1xi32>
    %c0_i32_90 = arith.constant 0 : i32
    %206 = arith.select %196, %c0_i32_90, %205 : i32
    %c7 = arith.constant 7 : index
    %207 = memref.load %arg17[%c7] : memref<8xi32, #tpu.memory_space<smem>>
    memref.store %206, %arg17[%c7] : memref<8xi32, #tpu.memory_space<smem>>
    %208 = arith.select %196, %192, %197 : i32
    %c1_i32_91 = arith.constant 1 : i32
    %209 = arith.addi %194, %c1_i32_91 : i32
    %210 = arith.select %196, %194, %209 : i32
    %211 = tpu.iota {dimensions = array<i32: 1>} : vector<1x128xi32>
    %212 = vector.broadcast %208 : i32 to vector<1x128xi32>
    %213 = arith.cmpi eq, %211, %212 : vector<1x128xi32>
    %214 = arith.extui %213 : vector<1x128xi1> to vector<1x128xi32>
    %215 = arith.sitofp %214 : vector<1x128xi32> to vector<1x128xf32>
    %cst_92 = arith.constant dense<0.000000e+00> : vector<1x32xf32>
    %216 = tpu.matmul %215, %85, %cst_92 {dimension_numbers = #tpu.dot_dimension_numbers<[1], [0], [0], [1], [0, 0, 1, 1], [], []>} : vector<1x128xf32>, vector<128x32xf32>, vector<1x32xf32> -> vector<1x32xf32>
    %c0_93 = arith.constant 0 : index
    %c0_94 = arith.constant 0 : index
    %217 = vector.load %arg16[%c0_93, %c0_94] : memref<1x32xf32, #tpu.memory_space<vmem>>, vector<1x32xf32>
    tpu.vector_store %arg16[%c0_93, %c0_94], %216 {strides = array<i32>} : memref<1x32xf32, #tpu.memory_space<vmem>>, vector<1x32xf32>,
    %c0_95 = arith.constant 0 : index
    %218 = memref.load %arg18[%c0_95] : memref<1xi32, #tpu.memory_space<smem>>
    memref.store %210, %arg18[%c0_95] : memref<1xi32, #tpu.memory_space<smem>>
    return
  }
}

</mosaic_0001>

<llo_original>
// kernel: decoder_forward.1
$region0: #{decoder_forward.1}
  #allocation0 [shape = 'u32[]', space=smem, size = 0x4, offset = 0x4, fixed_abs, tag = 'smem constant byte address 0x4 - core index']
  #allocation1 [shape = 'u32[144,128]{1,0:T(1,128)}', space=vmem, size = 0x12000, scoped, tag = 'internal scratch']
  %s0 = inlined_call_operand.hbm [shape: f32[1,32], index: 0, kind: input, shape index: {}]
  %s1 = inlined_call_operand.hbm [shape: f32[1,64], index: 1, kind: input, shape index: {}]
  %s2 = inlined_call_operand.vmem [shape: f32[32,192], index: 2, kind: input, shape index: {}]
  %s3 = inlined_call_operand.vmem [shape: f32[64,192], index: 3, kind: input, shape index: {}]
  %s4 = inlined_call_operand.vmem [shape: f32[1,192], index: 4, kind: input, shape index: {}]
  %s5 = inlined_call_operand.hbm [shape: f32[1,192], index: 5, kind: input, shape index: {}]
  %s6 = inlined_call_operand.vmem [shape: f32[64,32], index: 6, kind: input, shape index: {}]
  %s7 = inlined_call_operand.hbm [shape: f32[1,32], index: 7, kind: input, shape index: {}]
  %s8 = inlined_call_operand.vmem [shape: f32[32,96], index: 8, kind: input, shape index: {}]
  %s9 = inlined_call_operand.hbm [shape: f32[32,96], index: 9, kind: input, shape index: {}]
  %s10 = inlined_call_operand.hbm [shape: f32[1,96], index: 10, kind: input, shape index: {}]
  %s11 = inlined_call_operand.hbm [shape: f32[1,96], index: 11, kind: input, shape index: {}]
  %s12 = inlined_call_operand.hbm [shape: f32[32,128], index: 12, kind: input, shape index: {}]
  %s13 = inlined_call_operand.hbm [shape: f32[1,128], index: 13, kind: input, shape index: {}]
  %s14 = inlined_call_operand.vmem [shape: f32[128,32], index: 14, kind: input, shape index: {}]
  %s15 = inlined_call_operand.hbm [shape: f32[1,64], index: 15, kind: output, shape index: {0}]
  %s16 = inlined_call_operand.hbm [shape: f32[1,32], index: 16, kind: output, shape index: {1}]
  %s17 = inlined_call_operand.hbm [shape: s32[8], index: 17, kind: output, shape index: {2}]
  %s18 = inlined_call_operand.hbm [shape: s32[1], index: 18, kind: output, shape index: {3}]
  %19 = xla_tuple %s15, %s16, %s17, %s18
  %s20 = sld [smem:[#allocation0]]
  $region130: #{decoder_forward.1} parent=0
    _
  %s22 = ssub.s32 1, %s20
  %s23 = scalar_select 0, %s22, %s20
  $region1: #{decoder_forward.1} parent=0
    #allocation2 [shape = 'u8[512]{0}', space=vmem, size = 0x400, scoped, tag = 'input window, operand 0, single buffered']
    #allocation3 [shape = 's32[1]{0}', space=sflag, size = 0x4, scoped, tag = 'scoped memory for decoder_forward.1']
    #allocation4 [shape = 's32[1]{0}', space=sflag, size = 0x4, scoped, tag = 'scoped memory for decoder_forward.1']
    #allocation5 [shape = 's32[1]{0}', space=sflag, size = 0x4, scoped, tag = 'scoped memory for decoder_forward.1']
    #allocation6 [shape = 'u8[512]{0}', space=vmem, size = 0x400, scoped, tag = 'input window, operand 1, single buffered']
    #allocation7 [shape = 's32[1]{0}', space=sflag, size = 0x4, scoped, tag = 'scoped memory for decoder_forward.1']
    #allocation8 [shape = 'u8[1024]{0}', space=vmem, size = 0x400, scoped, tag = 'input window, operand 5, single buffered']
    #allocation9 [shape = 'u8[512]{0}', space=vmem, size = 0x400, scoped, tag = 'input window, operand 7, single buffered']
    #allocation10 [shape = 's32[1]{0}', space=sflag, size = 0x4, scoped, tag = 'scoped memory for decoder_forward.1']
    #allocation11 [shape = 'u8[16384]{0}', space=vmem, size = 0x4000, scoped, tag = 'input window, operand 9, single buffered']
    #allocation12 [shape = 'u8[512]{0}', space=vmem, size = 0x400, scoped, tag = 'input window, operand 10, single buffered']
    #allocation13 [shape = 's32[1]{0}', space=sflag, size = 0x4, scoped, tag = 'scoped memory for decoder_forward.1']
    #allocation14 [shape = 'u8[512]{0}', space=vmem, size = 0x400, scoped, tag = 'input window, operand 11, single buffered']
    #allocation15 [shape = 'u8[16384]{0}', space=vmem, size = 0x4000, scoped, tag = 'input window, operand 12, single buffered']
    #allocation16 [shape = 's32[1]{0}', space=sflag, size = 0x4, scoped, tag = 'scoped memory for decoder_forward.1']
    #allocation17 [shape = 'u8[512]{0}', space=vmem, size = 0x400, scoped, tag = 'input window, operand 13, single buffered']
    #allocation18 [shape = 'u8[512]{0}', space=vmem, size = 0x400, scoped, tag = 'output window, operand 0, single buffered']
    #allocation19 [shape = 'u8[512]{0}', space=vmem, size = 0x400, scoped, tag = 'output window, operand 1, single buffered']
    #allocation20 [shape = 's32[1]{0}', space=sflag, size = 0x4, scoped, tag = 'scoped memory for decoder_forward.1']
    #allocation21 [shape = 'u8[512]{0}', space=smem, size = 0x200, scoped, tag = 'output window, operand 2, single buffered']
    #allocation22 [shape = 'u8[512]{0}', space=smem, size = 0x200, scoped, tag = 'output window, operand 3, single buffered']
    #allocation23 [shape = 's32[1]{0}', space=sflag, size = 0x4, scoped, tag = 'scoped memory for decoder_forward.1']
    %24 = vsyncpa [#allocation3], 0
    %25 = vsyncpa [#allocation7], 0
    %26 = vsyncpa [#allocation10], 0
    %27 = vsyncpa [#allocation13], 0
    %28 = vsyncpa [#allocation16], 0
    %29 = vsyncpa [#allocation4], 0
    %30 = vsyncpa [#allocation20], 0
    %31 = vsyncpa [#allocation5], 0
    %32 = vsyncpa [#allocation23], 0
    // Predicated region
    $region2: #{decoder_forward.1} parent=1 // pred_check
      _
    $region3: #{decoder_forward.1} parent=1 // pred_check_branch
      %34 = sbr.rel (0) target = $region5
    $region4: #{decoder_forward.1} parent=1 // pred_region
      %s36 = ssub.s32 16, 16
      %37 = vsyncadd [#allocation3], %s36
      %s39 = sshll.u32 [#allocation2], 4
      %s40 = int_to_ptr.vmem [resolvable:$true] %s39
      %42 = dma.hbm_to_vmem [thread:$0]  %s0, 16, %s40, [#allocation3]
    $region5: #{decoder_forward.1} parent=1 // pred_fallthru
      _
    // Predicated region
    $region6: #{decoder_forward.1} parent=1 // pred_check
      _
    $region7: #{decoder_forward.1} parent=1 // pred_check_branch
      %44 = sbr.rel (0) target = $region9
    $region8: #{decoder_forward.1} parent=1 // pred_region
      %s46 = ssub.s32 16, 16
      %47 = vsyncadd [#allocation7], %s46
      %s49 = sshll.u32 [#allocation6], 4
      %s50 = int_to_ptr.vmem [resolvable:$true] %s49
      %52 = dma.hbm_to_vmem [thread:$0]  %s1, 16, %s50, [#allocation7]
    $region9: #{decoder_forward.1} parent=1 // pred_fallthru
      _
    // Predicated region
    $region10: #{decoder_forward.1} parent=1 // pred_check
      _
    $region11: #{decoder_forward.1} parent=1 // pred_check_branch
      %54 = sbr.rel (0) target = $region13
    $region12: #{decoder_forward.1} parent=1 // pred_region
      _
    $region13: #{decoder_forward.1} parent=1 // pred_fallthru
      _
    // Predicated region
    $region14: #{decoder_forward.1} parent=1 // pred_check
      _
    $region15: #{decoder_forward.1} parent=1 // pred_check_branch
      %56 = sbr.rel (0) target = $region17
    $region16: #{decoder_forward.1} parent=1 // pred_region
      _
    $region17: #{decoder_forward.1} parent=1 // pred_fallthru
      _
    // Predicated region
    $region18: #{decoder_forward.1} parent=1 // pred_check
      _
    $region19: #{decoder_forward.1} parent=1 // pred_check_branch
      %58 = sbr.rel (0) target = $region21
    $region20: #{decoder_forward.1} parent=1 // pred_region
      _
    $region21: #{decoder_forward.1} parent=1 // pred_fallthru
      _
    // Predicated region
    $region22: #{decoder_forward.1} parent=1 // pred_check
      _
    $region23: #{decoder_forward.1} parent=1 // pred_check_branch
      %60 = sbr.rel (0) target = $region25
    $region24: #{decoder_forward.1} parent=1 // pred_region
      %s62 = ssub.s32 32, 32
      %63 = vsyncadd [#allocation7], %s62
      %s65 = sshll.u32 [#allocation8], 4
      %s66 = int_to_ptr.vmem [resolvable:$true] %s65
      %68 = dma.hbm_to_vmem [thread:$0]  %s5, 32, %s66, [#allocation7]
    $region25: #{decoder_forward.1} parent=1 // pred_fallthru
      _
    // Predicated region
    $region26: #{decoder_forward.1} parent=1 // pred_check
      _
    $region27: #{decoder_forward.1} parent=1 // pred_check_branch
      %70 = sbr.rel (0) target = $region29
    $region28: #{decoder_forward.1} parent=1 // pred_region
      _
    $region29: #{decoder_forward.1} parent=1 // pred_fallthru
      _
    // Predicated region
    $region30: #{decoder_forward.1} parent=1 // pred_check
      _
    $region31: #{decoder_forward.1} parent=1 // pred_check_branch
      %72 = sbr.rel (0) target = $region33
    $region32: #{decoder_forward.1} parent=1 // pred_region
      %s74 = ssub.s32 16, 16
      %75 = vsyncadd [#allocation10], %s74
      %s77 = sshll.u32 [#allocation9], 4
      %s78 = int_to_ptr.vmem [resolvable:$true] %s77
      %80 = dma.hbm_to_vmem [thread:$0]  %s7, 16, %s78, [#allocation10]
    $region33: #{decoder_forward.1} parent=1 // pred_fallthru
      _
    // Predicated region
    $region34: #{decoder_forward.1} parent=1 // pred_check
      _
    $region35: #{decoder_forward.1} parent=1 // pred_check_branch
      %82 = sbr.rel (0) target = $region37
    $region36: #{decoder_forward.1} parent=1 // pred_region
      _
    $region37: #{decoder_forward.1} parent=1 // pred_fallthru
      _
    // Predicated region
    $region38: #{decoder_forward.1} parent=1 // pred_check
      _
    $region39: #{decoder_forward.1} parent=1 // pred_check_branch
      %84 = sbr.rel (0) target = $region41
    $region40: #{decoder_forward.1} parent=1 // pred_region
      %s86 = ssub.s32 512, 512
      %87 = vsyncadd [#allocation10], %s86
      %s88 = sshll.u32 [#allocation11], 4
      %s89 = int_to_ptr.vmem [resolvable:$true] %s88
      %94 = dma.hbm_to_vmem [thread:$0]  %s9, 512, %s89, [#allocation10], 128, 128, 8
    $region41: #{decoder_forward.1} parent=1 // pred_fallthru
      _
    // Predicated region
    $region42: #{decoder_forward.1} parent=1 // pred_check
      _
    $region43: #{decoder_forward.1} parent=1 // pred_check_branch
      %96 = sbr.rel (0) target = $region45
    $region44: #{decoder_forward.1} parent=1 // pred_region
      %s98 = ssub.s32 16, 16
      %99 = vsyncadd [#allocation13], %s98
      %s101 = sshll.u32 [#allocation12], 4
      %s102 = int_to_ptr.vmem [resolvable:$true] %s101
      %104 = dma.hbm_to_vmem [thread:$0]  %s10, 16, %s102, [#allocation13]
    $region45: #{decoder_forward.1} parent=1 // pred_fallthru
      _
    // Predicated region
    $region46: #{decoder_forward.1} parent=1 // pred_check
      _
    $region47: #{decoder_forward.1} parent=1 // pred_check_branch
      %106 = sbr.rel (0) target = $region49
    $region48: #{decoder_forward.1} parent=1 // pred_region
      %s108 = ssub.s32 16, 16
      %109 = vsyncadd [#allocation13], %s108
      %s111 = sshll.u32 [#allocation14], 4
      %s112 = int_to_ptr.vmem [resolvable:$true] %s111
      %114 = dma.hbm_to_vmem [thread:$0]  %s11, 16, %s112, [#allocation13]
    $region49: #{decoder_forward.1} parent=1 // pred_fallthru
      _
    // Predicated region
    $region50: #{decoder_forward.1} parent=1 // pred_check
      _
    $region51: #{decoder_forward.1} parent=1 // pred_check_branch
      %116 = sbr.rel (0) target = $region53
    $region52: #{decoder_forward.1} parent=1 // pred_region
      %s118 = ssub.s32 512, 512
      %119 = vsyncadd [#allocation16], %s118
      %s120 = sshll.u32 [#allocation15], 4
      %s121 = int_to_ptr.vmem [resolvable:$true] %s120
      %126 = dma.hbm_to_vmem [thread:$0]  %s12, 512, %s121, [#allocation16], 128, 128, 8
    $region53: #{decoder_forward.1} parent=1 // pred_fallthru
      _
    // Predicated region
    $region54: #{decoder_forward.1} parent=1 // pred_check
      _
    $region55: #{decoder_forward.1} parent=1 // pred_check_branch
      %128 = sbr.rel (0) target = $region57
    $region56: #{decoder_forward.1} parent=1 // pred_region
      %s130 = ssub.s32 16, 16
      %131 = vsyncadd [#allocation16], %s130
      %s133 = sshll.u32 [#allocation17], 4
      %s134 = int_to_ptr.vmem [resolvable:$true] %s133
      %136 = dma.hbm_to_vmem [thread:$0]  %s13, 16, %s134, [#allocation16]
    $region57: #{decoder_forward.1} parent=1 // pred_fallthru
      _
    // Predicated region
    $region58: #{decoder_forward.1} parent=1 // pred_check
      _
    $region59: #{decoder_forward.1} parent=1 // pred_check_branch
      %138 = sbr.rel (0) target = $region61
    $region60: #{decoder_forward.1} parent=1 // pred_region
      _
    $region61: #{decoder_forward.1} parent=1 // pred_fallthru
      _
    // Predicated region
    $region62: #{decoder_forward.1} parent=1 // pred_check
      _
    $region63: #{decoder_forward.1} parent=1 // pred_check_branch
      %140 = sbr.rel (0) target = $region65
    $region64: #{decoder_forward.1} parent=1 // pred_region
      %141 = dma.done [#allocation3], 16
    $region65: #{decoder_forward.1} parent=1 // pred_fallthru
      _
    // Predicated region
    $region66: #{decoder_forward.1} parent=1 // pred_check
      _
    $region67: #{decoder_forward.1} parent=1 // pred_check_branch
      %143 = sbr.rel (0) target = $region69
    $region68: #{decoder_forward.1} parent=1 // pred_region
      %144 = dma.done [#allocation7], 16
    $region69: #{decoder_forward.1} parent=1 // pred_fallthru
      _
    // Predicated region
    $region70: #{decoder_forward.1} parent=1 // pred_check
      _
    $region71: #{decoder_forward.1} parent=1 // pred_check_branch
      %146 = sbr.rel (0) target = $region73
    $region72: #{decoder_forward.1} parent=1 // pred_region
      %147 = dma.done [#allocation7], 32
    $region73: #{decoder_forward.1} parent=1 // pred_fallthru
      _
    // Predicated region
    $region74: #{decoder_forward.1} parent=1 // pred_check
      _
    $region75: #{decoder_forward.1} parent=1 // pred_check_branch
      %149 = sbr.rel (0) target = $region77
    $region76: #{decoder_forward.1} parent=1 // pred_region
      %150 = dma.done [#allocation10], 16
    $region77: #{decoder_forward.1} parent=1 // pred_fallthru
      _
    // Predicated region
    $region78: #{decoder_forward.1} parent=1 // pred_check
      _
    $region79: #{decoder_forward.1} parent=1 // pred_check_branch
      %152 = sbr.rel (0) target = $region81
    $region80: #{decoder_forward.1} parent=1 // pred_region
      %153 = dma.done [#allocation10], 512
    $region81: #{decoder_forward.1} parent=1 // pred_fallthru
      _
    // Predicated region
    $region82: #{decoder_forward.1} parent=1 // pred_check
      _
    $region83: #{decoder_forward.1} parent=1 // pred_check_branch
      %155 = sbr.rel (0) target = $region85
    $region84: #{decoder_forward.1} parent=1 // pred_region
      %156 = dma.done [#allocation13], 16
    $region85: #{decoder_forward.1} parent=1 // pred_fallthru
      _
    // Predicated region
    $region86: #{decoder_forward.1} parent=1 // pred_check
      _
    $region87: #{decoder_forward.1} parent=1 // pred_check_branch
      %158 = sbr.rel (0) target = $region89
    $region88: #{decoder_forward.1} parent=1 // pred_region
      %159 = dma.done [#allocation13], 16
    $region89: #{decoder_forward.1} parent=1 // pred_fallthru
      _
    // Predicated region
    $region90: #{decoder_forward.1} parent=1 // pred_check
      _
    $region91: #{decoder_forward.1} parent=1 // pred_check_branch
      %161 = sbr.rel (0) target = $region93
    $region92: #{decoder_forward.1} parent=1 // pred_region
      %162 = dma.done [#allocation16], 512
    $region93: #{decoder_forward.1} parent=1 // pred_fallthru
      _
    // Predicated region
    $region94: #{decoder_forward.1} parent=1 // pred_check
      _
    $region95: #{decoder_forward.1} parent=1 // pred_check_branch
      %164 = sbr.rel (0) target = $region97
    $region96: #{decoder_forward.1} parent=1 // pred_region
      %165 = dma.done [#allocation16], 16
    $region97: #{decoder_forward.1} parent=1 // pred_fallthru
      _
    %v166 = vld [vmem:[#allocation2] sm:$0x1]
    %v167 = vld [vmem:[%s2] sm:$0xff]
    %v168 = vld [vmem:[%s2 + $0x8] sm:$0xff]
    %v169 = vld [vmem:[%s2 + $0x10] sm:$0xff]
    %v170 = vld [vmem:[%s2 + $0x18] sm:$0xff]
    %v171 = vld [vmem:[%s2 + $0x20] sm:$0xff]
    %v172 = vld [vmem:[%s2 + $0x28] sm:$0xff]
    %v173 = vld [vmem:[%s2 + $0x30] sm:$0xff]
    %v174 = vld [vmem:[%s2 + $0x38] sm:$0xff]
    %v175 = vld [vmem:[%s4] sm:$0x3]
    %v177 = vlaneseq
    %v178 = vshrl.u32 %v177, 7
    %v179 = vsub.s32 0, %v178
    %v180 = vrot.slane %v175, %v179
    %v181 = vlaneseq
    %v182 = vshrl.u32 %v181, 7
    %v183 = vsub.s32 1, %v182
    %v184 = vrot.slane %v175, %v183
    %vm187 = vcmask 261120
    %v189 = vsel %vm187, %v166, 0
    %191 = vmatprep.subr.mxu0 %v168
    %192 = vmatpush1.msra.mxu0 %v167
    %193 = vmatprep.subr.mxu0 %v170
    %194 = vmatpush1.msra.mxu0 %v169
    %195 = vmatprep.subr.mxu0 %v172
    %196 = vmatpush1.msra.mxu0 %v171
    %197 = vmatprep.subr.mxu0 %v174
    %198 = vmatpush1.msra.mxu0 %v173
    %199 = vmatprep.subr.mxu0 0.0
    %200 = vmatpush1.msra.mxu0 0.0
    %201 = vmatprep.subr.mxu0 0.0
    %202 = vmatpush1.msra.mxu0 0.0
    %203 = vmatprep.subr.mxu0 0.0
    %204 = vmatpush1.msra.mxu0 0.0
    %205 = vmatprep.subr.mxu0 0.0
    %206 = vmatpush1.msra.mxu0 0.0
    %207 = vmatprep.subr.mxu0 0.0
    %208 = vmatpush1.msra.mxu0 0.0
    %209 = vmatprep.subr.mxu0 0.0
    %210 = vmatpush1.msra.mxu0 0.0
    %211 = vmatprep.subr.mxu0 0.0
    %212 = vmatpush1.msra.mxu0 0.0
    %213 = vmatprep.subr.mxu0 0.0
    %214 = vmatpush1.msra.mxu0 0.0
    %215 = vmatprep.subr.mxu0 0.0
    %216 = vmatpush1.msra.mxu0 0.0
    %217 = vmatprep.subr.mxu0 0.0
    %218 = vmatpush1.msra.mxu0 0.0
    %219 = vmatprep.subr.mxu0 0.0
    %220 = vmatpush1.msra.mxu0 0.0
    %221 = vmatprep.subr.mxu0 0.0
    %222 = vmatpush1.msra.mxu0 0.0
    %223 = vmatprep.subr.mxu0 0.0
    %224 = vmatpush1.msra.mxu0 0.0
    %225 = vmatprep.subr.mxu0 0.0
    %226 = vmatpush1.msra.mxu0 0.0
    %227 = vmatprep.subr.mxu0 0.0
    %228 = vmatpush1.msra.mxu0 0.0
    %229 = vmatprep.subr.mxu0 0.0
    %230 = vmatpush1.msra.mxu0 0.0
    %231 = vmatprep.subr.mxu0 0.0
    %232 = vmatpush1.msra.mxu0 0.0
    %233 = vmatprep.subr.mxu0 0.0
    %234 = vmatpush1.msra.mxu0 0.0
    %235 = vmatprep.subr.mxu0 0.0
    %236 = vmatpush1.msra.mxu0 0.0
    %237 = vmatprep.subr.mxu0 0.0
    %238 = vmatpush1.msra.mxu0 0.0
    %239 = vmatprep.subr.mxu0 0.0
    %240 = vmatpush1.msra.mxu0 0.0
    %241 = vmatprep.subr.mxu0 0.0
    %242 = vmatpush1.msra.mxu0 0.0
    %243 = vmatprep.subr.mxu0 0.0
    %244 = vmatpush1.msra.mxu0 0.0
    %245 = vmatprep.subr.mxu0 0.0
    %246 = vmatpush1.msra.mxu0 0.0
    %247 = vmatprep.subr.mxu0 0.0
    %248 = vmatpush1.msra.mxu0 0.0
    %249 = vmatprep.subr.mxu0 0.0
    %250 = vmatpush1.msra.mxu0 0.0
    %251 = vmatprep.subr.mxu0 0.0
    %252 = vmatpush1.msra.mxu0 0.0
    %253 = vmatprep.subr.mxu0 0.0
    %254 = vmatpush1.msra.mxu0 0.0
    %255 = vmatprep.mubr.f32.mxu0 0.0
    %256 = vmatmul.mubr.f32.gmra.mrb[0].mxu0 %v189
    %v257 = vpop.f32.mrb[0].mxu0
    %v258 = vadd.f32 %v180, %v257
    %v259 = vpop.f32.mrb[0].mxu0
    %v260 = vadd.f32 %v184, %v259
    %261 = vdwg.mxu0
    %v262 = vld [vmem:[#allocation6] sm:$0x1]
    %v263 = vld [vmem:[%s3] sm:$0xff]
    %v264 = vld [vmem:[%s3 + $0x8] sm:$0xff]
    %v265 = vld [vmem:[%s3 + $0x10] sm:$0xff]
    %v266 = vld [vmem:[%s3 + $0x18] sm:$0xff]
    %v267 = vld [vmem:[%s3 + $0x20] sm:$0xff]
    %v268 = vld [vmem:[%s3 + $0x28] sm:$0xff]
    %v269 = vld [vmem:[%s3 + $0x30] sm:$0xff]
    %v270 = vld [vmem:[%s3 + $0x38] sm:$0xff]
    %v271 = vld [vmem:[%s3 + $0x40] sm:$0xff]
    %v272 = vld [vmem:[%s3 + $0x48] sm:$0xff]
    %v273 = vld [vmem:[%s3 + $0x50] sm:$0xff]
    %v274 = vld [vmem:[%s3 + $0x58] sm:$0xff]
    %v275 = vld [vmem:[%s3 + $0x60] sm:$0xff]
    %v276 = vld [vmem:[%s3 + $0x68] sm:$0xff]
    %v277 = vld [vmem:[%s3 + $0x70] sm:$0xff]
    %v278 = vld [vmem:[%s3 + $0x78] sm:$0xff]
    %v279 = vld [vmem:[#allocation8] sm:$0x3]
    %v281 = vlaneseq
    %v282 = vshrl.u32 %v281, 7
    %v283 = vsub.s32 0, %v282
    %v284 = vrot.slane %v279, %v283
    %v285 = vlaneseq
    %v286 = vshrl.u32 %v285, 7
    %v287 = vsub.s32 1, %v286
    %v288 = vrot.slane %v279, %v287
    %vm291 = vcmask 523264
    %v293 = vsel %vm291, %v262, 0
    %295 = vmatprep.subr.mxu0 %v264
    %296 = vmatpush1.msra.mxu0 %v263
    %297 = vmatprep.subr.mxu0 %v266
    %298 = vmatpush1.msra.mxu0 %v265
    %299 = vmatprep.subr.mxu0 %v268
    %300 = vmatpush1.msra.mxu0 %v267
    %301 = vmatprep.subr.mxu0 %v270
    %302 = vmatpush1.msra.mxu0 %v269
    %303 = vmatprep.subr.mxu0 %v272
    %304 = vmatpush1.msra.mxu0 %v271
    %305 = vmatprep.subr.mxu0 %v274
    %306 = vmatpush1.msra.mxu0 %v273
    %307 = vmatprep.subr.mxu0 %v276
    %308 = vmatpush1.msra.mxu0 %v275
    %309 = vmatprep.subr.mxu0 %v278
    %310 = vmatpush1.msra.mxu0 %v277
    %311 = vmatprep.subr.mxu0 0.0
    %312 = vmatpush1.msra.mxu0 0.0
    %313 = vmatprep.subr.mxu0 0.0
    %314 = vmatpush1.msra.mxu0 0.0
    %315 = vmatprep.subr.mxu0 0.0
    %316 = vmatpush1.msra.mxu0 0.0
    %317 = vmatprep.subr.mxu0 0.0
    %318 = vmatpush1.msra.mxu0 0.0
    %319 = vmatprep.subr.mxu0 0.0
    %320 = vmatpush1.msra.mxu0 0.0
    %321 = vmatprep.subr.mxu0 0.0
    %322 = vmatpush1.msra.mxu0 0.0
    %323 = vmatprep.subr.mxu0 0.0
    %324 = vmatpush1.msra.mxu0 0.0
    %325 = vmatprep.subr.mxu0 0.0
    %326 = vmatpush1.msra.mxu0 0.0
    %327 = vmatprep.subr.mxu0 0.0
    %328 = vmatpush1.msra.mxu0 0.0
    %329 = vmatprep.subr.mxu0 0.0
    %330 = vmatpush1.msra.mxu0 0.0
    %331 = vmatprep.subr.mxu0 0.0
    %332 = vmatpush1.msra.mxu0 0.0
    %333 = vmatprep.subr.mxu0 0.0
    %334 = vmatpush1.msra.mxu0 0.0
    %335 = vmatprep.subr.mxu0 0.0
    %336 = vmatpush1.msra.mxu0 0.0
    %337 = vmatprep.subr.mxu0 0.0
    %338 = vmatpush1.msra.mxu0 0.0
    %339 = vmatprep.subr.mxu0 0.0
    %340 = vmatpush1.msra.mxu0 0.0
    %341 = vmatprep.subr.mxu0 0.0
    %342 = vmatpush1.msra.mxu0 0.0
    %343 = vmatprep.subr.mxu0 0.0
    %344 = vmatpush1.msra.mxu0 0.0
    %345 = vmatprep.subr.mxu0 0.0
    %346 = vmatpush1.msra.mxu0 0.0
    %347 = vmatprep.subr.mxu0 0.0
    %348 = vmatpush1.msra.mxu0 0.0
    %349 = vmatprep.subr.mxu0 0.0
    %350 = vmatpush1.msra.mxu0 0.0
    %351 = vmatprep.subr.mxu0 0.0
    %352 = vmatpush1.msra.mxu0 0.0
    %353 = vmatprep.subr.mxu0 0.0
    %354 = vmatpush1.msra.mxu0 0.0
    %355 = vmatprep.subr.mxu0 0.0
    %356 = vmatpush1.msra.mxu0 0.0
    %357 = vmatprep.subr.mxu0 0.0
    %358 = vmatpush1.msra.mxu0 0.0
    %359 = vmatprep.mubr.f32.mxu0 0.0
    %360 = vmatmul.mubr.f32.gmra.mrb[0].mxu0 %v293
    %v361 = vpop.f32.mrb[0].mxu0
    %v362 = vadd.f32 %v284, %v361
    %v363 = vpop.f32.mrb[0].mxu0
    %v364 = vadd.f32 %v288, %v363
    %365 = vdwg.mxu0
    %v366 = vadd.f32 %v258, %v362
    %v367 = vxor.u32 %v366, 2147483648
    %v368 = vmul.f32 %v367, 1.442695
    %v369 = vpow.pop %v368
    %v370 = vadd.f32 %v369, 1.0
    %v371 = vrcp.pop %v370
    %v372 = vmul.f32 1.0, %v371
    %v373 = vmul.f32 %v372, %v364
    %v374 = vadd.f32 %v260, %v373
    %v375 = vtanh.pop %v374
    %v376 = vsub.f32 1.0, %v372
    %378 = vrot.lane.b32.xlu0 %v375, 64
    %v379 = vpop.permute.xlu0 %378
    %v381 = vmul.f32 %v376, %v379
    %v382 = vlaneseq
    %v383 = vshrl.u32 %v382, 7
    %v384 = vsub.s32 0, %v383
    %v385 = vrot.slane %v262, %v384
    %386 = vrot.lane.b32.xlu0 %v385, 64
    %v387 = vpop.permute.xlu0 %386
    %v389 = vmul.f32 %v372, %v387
    %v390 = vadd.f32 %v381, %v389
    %392 = vrot.lane.b32.xlu0 %v390, 64
    %v393 = vpop.permute.xlu0 %392
    %vm395 = vcmask 516096
    %396 = vst.msk [vmem:[#allocation18] sm:$0x1] %vm395, %v393
    %v397 = vld [vmem:[%s6] sm:$0xff]
    %v398 = vld [vmem:[%s6 + $0x8] sm:$0xff]
    %v399 = vld [vmem:[%s6 + $0x10] sm:$0xff]
    %v400 = vld [vmem:[%s6 + $0x18] sm:$0xff]
    %v401 = vld [vmem:[%s6 + $0x20] sm:$0xff]
    %v402 = vld [vmem:[%s6 + $0x28] sm:$0xff]
    %v403 = vld [vmem:[%s6 + $0x30] sm:$0xff]
    %v404 = vld [vmem:[%s6 + $0x38] sm:$0xff]
    %v405 = vld [vmem:[#allocation9] sm:$0x1]
    %v406 = vsel %vm291, %v393, 0
    %408 = vmatprep.subr.mxu0 0.0
    %409 = vmatpush1.msra.mxu0 %v397
    %410 = vmatprep.subr.mxu0 0.0
    %411 = vmatpush1.msra.mxu0 %v398
    %412 = vmatprep.subr.mxu0 0.0
    %413 = vmatpush1.msra.mxu0 %v399
    %414 = vmatprep.subr.mxu0 0.0
    %415 = vmatpush1.msra.mxu0 %v400
    %416 = vmatprep.subr.mxu0 0.0
    %417 = vmatpush1.msra.mxu0 %v401
    %418 = vmatprep.subr.mxu0 0.0
    %419 = vmatpush1.msra.mxu0 %v402
    %420 = vmatprep.subr.mxu0 0.0
    %421 = vmatpush1.msra.mxu0 %v403
    %422 = vmatprep.subr.mxu0 0.0
    %423 = vmatpush1.msra.mxu0 %v404
    %424 = vmatprep.subr.mxu0 0.0
    %425 = vmatpush1.msra.mxu0 0.0
    %426 = vmatprep.subr.mxu0 0.0
    %427 = vmatpush1.msra.mxu0 0.0
    %428 = vmatprep.subr.mxu0 0.0
    %429 = vmatpush1.msra.mxu0 0.0
    %430 = vmatprep.subr.mxu0 0.0
    %431 = vmatpush1.msra.mxu0 0.0
    %432 = vmatprep.subr.mxu0 0.0
    %433 = vmatpush1.msra.mxu0 0.0
    %434 = vmatprep.subr.mxu0 0.0
    %435 = vmatpush1.msra.mxu0 0.0
    %436 = vmatprep.subr.mxu0 0.0
    %437 = vmatpush1.msra.mxu0 0.0
    %438 = vmatprep.subr.mxu0 0.0
    %439 = vmatpush1.msra.mxu0 0.0
    %440 = vmatprep.subr.mxu0 0.0
    %441 = vmatpush1.msra.mxu0 0.0
    %442 = vmatprep.subr.mxu0 0.0
    %443 = vmatpush1.msra.mxu0 0.0
    %444 = vmatprep.subr.mxu0 0.0
    %445 = vmatpush1.msra.mxu0 0.0
    %446 = vmatprep.subr.mxu0 0.0
    %447 = vmatpush1.msra.mxu0 0.0
    %448 = vmatprep.subr.mxu0 0.0
    %449 = vmatpush1.msra.mxu0 0.0
    %450 = vmatprep.subr.mxu0 0.0
    %451 = vmatpush1.msra.mxu0 0.0
    %452 = vmatprep.subr.mxu0 0.0
    %453 = vmatpush1.msra.mxu0 0.0
    %454 = vmatprep.subr.mxu0 0.0
    %455 = vmatpush1.msra.mxu0 0.0
    %456 = vmatprep.subr.mxu0 0.0
    %457 = vmatpush1.msra.mxu0 0.0
    %458 = vmatprep.subr.mxu0 0.0
    %459 = vmatpush1.msra.mxu0 0.0
    %460 = vmatprep.subr.mxu0 0.0
    %461 = vmatpush1.msra.mxu0 0.0
    %462 = vmatprep.subr.mxu0 0.0
    %463 = vmatpush1.msra.mxu0 0.0
    %464 = vmatprep.subr.mxu0 0.0
    %465 = vmatpush1.msra.mxu0 0.0
    %466 = vmatprep.subr.mxu0 0.0
    %467 = vmatpush1.msra.mxu0 0.0
    %468 = vmatprep.subr.mxu0 0.0
    %469 = vmatpush1.msra.mxu0 0.0
    %470 = vmatprep.subr.mxu0 0.0
    %471 = vmatpush1.msra.mxu0 0.0
    %472 = vmatprep.mubr.f32.mxu0 0.0
    %473 = vmatmul.mubr.f32.gmra.mrb[0].mxu0 %v406
    %v474 = vpop.f32.mrb[0].mxu0
    %v475 = vadd.f32 %v405, %v474
    %v476 = vpop.f32.mrb[0].mxu0
    %477 = vdwg.mxu0
    %v478 = vmax.f32 %v475, 0.0
    %v479 = vld [vmem:[%s14] sm:$0xff]
    %v480 = vld [vmem:[%s14 + $0x8] sm:$0xff]
    %v481 = vld [vmem:[%s14 + $0x10] sm:$0xff]
    %v482 = vld [vmem:[%s14 + $0x18] sm:$0xff]
    %v483 = vld [vmem:[%s14 + $0x20] sm:$0xff]
    %v484 = vld [vmem:[%s14 + $0x28] sm:$0xff]
    %v485 = vld [vmem:[%s14 + $0x30] sm:$0xff]
    %v486 = vld [vmem:[%s14 + $0x38] sm:$0xff]
    %v487 = vld [vmem:[%s14 + $0x40] sm:$0xff]
    %v488 = vld [vmem:[%s14 + $0x48] sm:$0xff]
    %v489 = vld [vmem:[%s14 + $0x50] sm:$0xff]
    %v490 = vld [vmem:[%s14 + $0x58] sm:$0xff]
    %v491 = vld [vmem:[%s14 + $0x60] sm:$0xff]
    %v492 = vld [vmem:[%s14 + $0x68] sm:$0xff]
    %v493 = vld [vmem:[%s14 + $0x70] sm:$0xff]
    %v494 = vld [vmem:[%s14 + $0x78] sm:$0xff]
    %v495 = vmax.f32 %v479, 0.0
    %v496 = vmax.f32 %v480, 0.0
    %v497 = vmax.f32 %v481, 0.0
    %v498 = vmax.f32 %v482, 0.0
    %v499 = vmax.f32 %v483, 0.0
    %v500 = vmax.f32 %v484, 0.0
    %v501 = vmax.f32 %v485, 0.0
    %v502 = vmax.f32 %v486, 0.0
    %v503 = vmax.f32 %v487, 0.0
    %v504 = vmax.f32 %v488, 0.0
    %v505 = vmax.f32 %v489, 0.0
    %v506 = vmax.f32 %v490, 0.0
    %v507 = vmax.f32 %v491, 0.0
    %v508 = vmax.f32 %v492, 0.0
    %v509 = vmax.f32 %v493, 0.0
    %v510 = vmax.f32 %v494, 0.0
    %v511 = vld [vmem:[%s8] sm:$0xff]
    %v512 = vld [vmem:[%s8 + $0x8] sm:$0xff]
    %v513 = vld [vmem:[%s8 + $0x10] sm:$0xff]
    %v514 = vld [vmem:[%s8 + $0x18] sm:$0xff]
    %v515 = vld [vmem:[#allocation12] sm:$0x1]
    %v517 = vlaneseq
    %v518 = vshrl.u32 %v517, 7
    %v519 = vsub.s32 0, %v518
    %v520 = vrot.slane %v515, %v519
    %v523 = vsel %vm187, %v495, 0
    %v526 = vsel %vm187, %v496, 0
    %v529 = vsel %vm187, %v497, 0
    %v532 = vsel %vm187, %v498, 0
    %v535 = vsel %vm187, %v499, 0
    %v538 = vsel %vm187, %v500, 0
    %v541 = vsel %vm187, %v501, 0
    %v544 = vsel %vm187, %v502, 0
    %v547 = vsel %vm187, %v503, 0
    %v550 = vsel %vm187, %v504, 0
    %v553 = vsel %vm187, %v505, 0
    %v556 = vsel %vm187, %v506, 0
    %v559 = vsel %vm187, %v507, 0
    %v562 = vsel %vm187, %v508, 0
    %v565 = vsel %vm187, %v509, 0
    %v568 = vsel %vm187, %v510, 0
    %570 = vmatprep.subr.mxu0 0.0
    %571 = vmatpush1.msra.mxu0 %v511
    %572 = vmatprep.subr.mxu0 0.0
    %573 = vmatpush1.msra.mxu0 %v512
    %574 = vmatprep.subr.mxu0 0.0
    %575 = vmatpush1.msra.mxu0 %v513
    %576 = vmatprep.subr.mxu0 0.0
    %577 = vmatpush1.msra.mxu0 %v514
    %578 = vmatprep.subr.mxu0 0.0
    %579 = vmatpush1.msra.mxu0 0.0
    %580 = vmatprep.subr.mxu0 0.0
    %581 = vmatpush1.msra.mxu0 0.0
    %582 = vmatprep.subr.mxu0 0.0
    %583 = vmatpush1.msra.mxu0 0.0
    %584 = vmatprep.subr.mxu0 0.0
    %585 = vmatpush1.msra.mxu0 0.0
    %586 = vmatprep.subr.mxu0 0.0
    %587 = vmatpush1.msra.mxu0 0.0
    %588 = vmatprep.subr.mxu0 0.0
    %589 = vmatpush1.msra.mxu0 0.0
    %590 = vmatprep.subr.mxu0 0.0
    %591 = vmatpush1.msra.mxu0 0.0
    %592 = vmatprep.subr.mxu0 0.0
    %593 = vmatpush1.msra.mxu0 0.0
    %594 = vmatprep.subr.mxu0 0.0
    %595 = vmatpush1.msra.mxu0 0.0
    %596 = vmatprep.subr.mxu0 0.0
    %597 = vmatpush1.msra.mxu0 0.0
    %598 = vmatprep.subr.mxu0 0.0
    %599 = vmatpush1.msra.mxu0 0.0
    %600 = vmatprep.subr.mxu0 0.0
    %601 = vmatpush1.msra.mxu0 0.0
    %602 = vmatprep.subr.mxu0 0.0
    %603 = vmatpush1.msra.mxu0 0.0
    %604 = vmatprep.subr.mxu0 0.0
    %605 = vmatpush1.msra.mxu0 0.0
    %606 = vmatprep.subr.mxu0 0.0
    %607 = vmatpush1.msra.mxu0 0.0
    %608 = vmatprep.subr.mxu0 0.0
    %609 = vmatpush1.msra.mxu0 0.0
    %610 = vmatprep.subr.mxu0 0.0
    %611 = vmatpush1.msra.mxu0 0.0
    %612 = vmatprep.subr.mxu0 0.0
    %613 = vmatpush1.msra.mxu0 0.0
    %614 = vmatprep.subr.mxu0 0.0
    %615 = vmatpush1.msra.mxu0 0.0
    %616 = vmatprep.subr.mxu0 0.0
    %617 = vmatpush1.msra.mxu0 0.0
    %618 = vmatprep.subr.mxu0 0.0
    %619 = vmatpush1.msra.mxu0 0.0
    %620 = vmatprep.subr.mxu0 0.0
    %621 = vmatpush1.msra.mxu0 0.0
    %622 = vmatprep.subr.mxu0 0.0
    %623 = vmatpush1.msra.mxu0 0.0
    %624 = vmatprep.subr.mxu0 0.0
    %625 = vmatpush1.msra.mxu0 0.0
    %626 = vmatprep.subr.mxu0 0.0
    %627 = vmatpush1.msra.mxu0 0.0
    %628 = vmatprep.subr.mxu0 0.0
    %629 = vmatpush1.msra.mxu0 0.0
    %630 = vmatprep.subr.mxu0 0.0
    %631 = vmatpush1.msra.mxu0 0.0
    %632 = vmatprep.subr.mxu0 0.0
    %633 = vmatpush1.msra.mxu0 0.0
    %634 = vmatprep.mubr.f32.mxu0 0.0
    %635 = vmatmul.mubr.f32.gmra.mrb[0].mxu0 %v523
    %v636 = vpop.f32.mrb[0].mxu0
    %v637 = vadd.f32 %v520, %v636
    %v638 = vpop.f32.mrb[0].mxu0
    %639 = vmatprep.mubr.f32.mxu0 0.0
    %640 = vmatmul.mubr.f32.gmra.mrb[0].mxu0 %v526
    %v641 = vpop.f32.mrb[0].mxu0
    %v642 = vadd.f32 %v520, %v641
    %v643 = vpop.f32.mrb[0].mxu0
    %644 = vmatprep.mubr.f32.mxu0 0.0
    %645 = vmatmul.mubr.f32.gmra.mrb[0].mxu0 %v529
    %v646 = vpop.f32.mrb[0].mxu0
    %v647 = vadd.f32 %v520, %v646
    %v648 = vpop.f32.mrb[0].mxu0
    %649 = vmatprep.mubr.f32.mxu0 0.0
    %650 = vmatmul.mubr.f32.gmra.mrb[0].mxu0 %v532
    %v651 = vpop.f32.mrb[0].mxu0
    %v652 = vadd.f32 %v520, %v651
    %v653 = vpop.f32.mrb[0].mxu0
    %654 = vmatprep.mubr.f32.mxu0 0.0
    %655 = vmatmul.mubr.f32.gmra.mrb[0].mxu0 %v535
    %v656 = vpop.f32.mrb[0].mxu0
    %v657 = vadd.f32 %v520, %v656
    %v658 = vpop.f32.mrb[0].mxu0
    %659 = vmatprep.mubr.f32.mxu0 0.0
    %660 = vmatmul.mubr.f32.gmra.mrb[0].mxu0 %v538
    %v661 = vpop.f32.mrb[0].mxu0
    %v662 = vadd.f32 %v520, %v661
    %v663 = vpop.f32.mrb[0].mxu0
    %664 = vmatprep.mubr.f32.mxu0 0.0
    %665 = vmatmul.mubr.f32.gmra.mrb[0].mxu0 %v541
    %v666 = vpop.f32.mrb[0].mxu0
    %v667 = vadd.f32 %v520, %v666
    %v668 = vpop.f32.mrb[0].mxu0
    %669 = vmatprep.mubr.f32.mxu0 0.0
    %670 = vmatmul.mubr.f32.gmra.mrb[0].mxu0 %v544
    %v671 = vpop.f32.mrb[0].mxu0
    %v672 = vadd.f32 %v520, %v671
    %v673 = vpop.f32.mrb[0].mxu0
    %674 = vmatprep.mubr.f32.mxu0 0.0
    %675 = vmatmul.mubr.f32.gmra.mrb[0].mxu0 %v547
    %v676 = vpop.f32.mrb[0].mxu0
    %v677 = vadd.f32 %v520, %v676
    %v678 = vpop.f32.mrb[0].mxu0
    %679 = vmatprep.mubr.f32.mxu0 0.0
    %680 = vmatmul.mubr.f32.gmra.mrb[0].mxu0 %v550
    %v681 = vpop.f32.mrb[0].mxu0
    %v682 = vadd.f32 %v520, %v681
    %v683 = vpop.f32.mrb[0].mxu0
    %684 = vmatprep.mubr.f32.mxu0 0.0
    %685 = vmatmul.mubr.f32.gmra.mrb[0].mxu0 %v553
    %v686 = vpop.f32.mrb[0].mxu0
    %v687 = vadd.f32 %v520, %v686
    %v688 = vpop.f32.mrb[0].mxu0
    %689 = vmatprep.mubr.f32.mxu0 0.0
    %690 = vmatmul.mubr.f32.gmra.mrb[0].mxu0 %v556
    %v691 = vpop.f32.mrb[0].mxu0
    %v692 = vadd.f32 %v520, %v691
    %v693 = vpop.f32.mrb[0].mxu0
    %694 = vmatprep.mubr.f32.mxu0 0.0
    %695 = vmatmul.mubr.f32.gmra.mrb[0].mxu0 %v559
    %v696 = vpop.f32.mrb[0].mxu0
    %v697 = vadd.f32 %v520, %v696
    %v698 = vpop.f32.mrb[0].mxu0
    %699 = vmatprep.mubr.f32.mxu0 0.0
    %700 = vmatmul.mubr.f32.gmra.mrb[0].mxu0 %v562
    %v701 = vpop.f32.mrb[0].mxu0
    %v702 = vadd.f32 %v520, %v701
    %v703 = vpop.f32.mrb[0].mxu0
    %704 = vmatprep.mubr.f32.mxu0 0.0
    %705 = vmatmul.mubr.f32.gmra.mrb[0].mxu0 %v565
    %v706 = vpop.f32.mrb[0].mxu0
    %v707 = vadd.f32 %v520, %v706
    %v708 = vpop.f32.mrb[0].mxu0
    %709 = vmatprep.mubr.f32.mxu0 0.0
    %710 = vmatmul.mubr.f32.gmra.mrb[0].mxu0 %v568
    %v711 = vpop.f32.mrb[0].mxu0
    %v712 = vadd.f32 %v520, %v711
    %v713 = vpop.f32.mrb[0].mxu0
    %714 = vdwg.mxu0
    %v715 = vld [vmem:[#allocation11] sm:$0xff]
    %v716 = vld [vmem:[#allocation11 + $0x8] sm:$0xff]
    %v717 = vld [vmem:[#allocation11 + $0x10] sm:$0xff]
    %v718 = vld [vmem:[#allocation11 + $0x18] sm:$0xff]
    %v719 = vld [vmem:[#allocation14] sm:$0x1]
    %v721 = vsel %vm187, %v478, 0
    %723 = vmatprep.subr.mxu0 0.0
    %724 = vmatpush1.msra.mxu0 %v715
    %725 = vmatprep.subr.mxu0 0.0
    %726 = vmatpush1.msra.mxu0 %v716
    %727 = vmatprep.subr.mxu0 0.0
    %728 = vmatpush1.msra.mxu0 %v717
    %729 = vmatprep.subr.mxu0 0.0
    %730 = vmatpush1.msra.mxu0 %v718
    %731 = vmatprep.subr.mxu0 0.0
    %732 = vmatpush1.msra.mxu0 0.0
    %733 = vmatprep.subr.mxu0 0.0
    %734 = vmatpush1.msra.mxu0 0.0
    %735 = vmatprep.subr.mxu0 0.0
    %736 = vmatpush1.msra.mxu0 0.0
    %737 = vmatprep.subr.mxu0 0.0
    %738 = vmatpush1.msra.mxu0 0.0
    %739 = vmatprep.subr.mxu0 0.0
    %740 = vmatpush1.msra.mxu0 0.0
    %741 = vmatprep.subr.mxu0 0.0
    %742 = vmatpush1.msra.mxu0 0.0
    %743 = vmatprep.subr.mxu0 0.0
    %744 = vmatpush1.msra.mxu0 0.0
    %745 = vmatprep.subr.mxu0 0.0
    %746 = vmatpush1.msra.mxu0 0.0
    %747 = vmatprep.subr.mxu0 0.0
    %748 = vmatpush1.msra.mxu0 0.0
    %749 = vmatprep.subr.mxu0 0.0
    %750 = vmatpush1.msra.mxu0 0.0
    %751 = vmatprep.subr.mxu0 0.0
    %752 = vmatpush1.msra.mxu0 0.0
    %753 = vmatprep.subr.mxu0 0.0
    %754 = vmatpush1.msra.mxu0 0.0
    %755 = vmatprep.subr.mxu0 0.0
    %756 = vmatpush1.msra.mxu0 0.0
    %757 = vmatprep.subr.mxu0 0.0
    %758 = vmatpush1.msra.mxu0 0.0
    %759 = vmatprep.subr.mxu0 0.0
    %760 = vmatpush1.msra.mxu0 0.0
    %761 = vmatprep.subr.mxu0 0.0
    %762 = vmatpush1.msra.mxu0 0.0
    %763 = vmatprep.subr.mxu0 0.0
    %764 = vmatpush1.msra.mxu0 0.0
    %765 = vmatprep.subr.mxu0 0.0
    %766 = vmatpush1.msra.mxu0 0.0
    %767 = vmatprep.subr.mxu0 0.0
    %768 = vmatpush1.msra.mxu0 0.0
    %769 = vmatprep.subr.mxu0 0.0
    %770 = vmatpush1.msra.mxu0 0.0
    %771 = vmatprep.subr.mxu0 0.0
    %772 = vmatpush1.msra.mxu0 0.0
    %773 = vmatprep.subr.mxu0 0.0
    %774 = vmatpush1.msra.mxu0 0.0
    %775 = vmatprep.subr.mxu0 0.0
    %776 = vmatpush1.msra.mxu0 0.0
    %777 = vmatprep.subr.mxu0 0.0
    %778 = vmatpush1.msra.mxu0 0.0
    %779 = vmatprep.subr.mxu0 0.0
    %780 = vmatpush1.msra.mxu0 0.0
    %781 = vmatprep.subr.mxu0 0.0
    %782 = vmatpush1.msra.mxu0 0.0
    %783 = vmatprep.subr.mxu0 0.0
    %784 = vmatpush1.msra.mxu0 0.0
    %785 = vmatprep.subr.mxu0 0.0
    %786 = vmatpush1.msra.mxu0 0.0
    %787 = vmatprep.mubr.f32.mxu0 0.0
    %788 = vmatmul.mubr.f32.gmra.mrb[0].mxu0 %v721
    %v789 = vpop.f32.mrb[0].mxu0
    %v790 = vadd.f32 %v719, %v789
    %v791 = vpop.f32.mrb[0].mxu0
    %792 = vdwg.mxu0
    %v793 = vlaneseq
    %v794 = vshrl.u32 %v793, 7
    %v795 = vsub.s32 0, %v794
    %v796 = vrot.slane %v790, %v795
    %v797 = vadd.f32 %v637, %v796
    %v798 = vadd.f32 %v642, %v796
    %v799 = vadd.f32 %v647, %v796
    %v800 = vadd.f32 %v652, %v796
    %v801 = vadd.f32 %v657, %v796
    %v802 = vadd.f32 %v662, %v796
    %v803 = vadd.f32 %v667, %v796
    %v804 = vadd.f32 %v672, %v796
    %v805 = vadd.f32 %v677, %v796
    %v806 = vadd.f32 %v682, %v796
    %v807 = vadd.f32 %v687, %v796
    %v808 = vadd.f32 %v692, %v796
    %v809 = vadd.f32 %v697, %v796
    %v810 = vadd.f32 %v702, %v796
    %v811 = vadd.f32 %v707, %v796
    %v812 = vadd.f32 %v712, %v796
    %v813 = vxor.u32 %v797, 2147483648
    %v814 = vxor.u32 %v798, 2147483648
    %v815 = vxor.u32 %v799, 2147483648
    %v816 = vxor.u32 %v800, 2147483648
    %v817 = vxor.u32 %v801, 2147483648
    %v818 = vxor.u32 %v802, 2147483648
    %v819 = vxor.u32 %v803, 2147483648
    %v820 = vxor.u32 %v804, 2147483648
    %v821 = vxor.u32 %v805, 2147483648
    %v822 = vxor.u32 %v806, 2147483648
    %v823 = vxor.u32 %v807, 2147483648
    %v824 = vxor.u32 %v808, 2147483648
    %v825 = vxor.u32 %v809, 2147483648
    %v826 = vxor.u32 %v810, 2147483648
    %v827 = vxor.u32 %v811, 2147483648
    %v828 = vxor.u32 %v812, 2147483648
    %v829 = vmul.f32 %v813, 1.442695
    %v830 = vpow.pop %v829
    %v831 = vmul.f32 %v814, 1.442695
    %v832 = vpow.pop %v831
    %v833 = vmul.f32 %v815, 1.442695
    %v834 = vpow.pop %v833
    %v835 = vmul.f32 %v816, 1.442695
    %v836 = vpow.pop %v835
    %v837 = vmul.f32 %v817, 1.442695
    %v838 = vpow.pop %v837
    %v839 = vmul.f32 %v818, 1.442695
    %v840 = vpow.pop %v839
    %v841 = vmul.f32 %v819, 1.442695
    %v842 = vpow.pop %v841
    %v843 = vmul.f32 %v820, 1.442695
    %v844 = vpow.pop %v843
    %v845 = vmul.f32 %v821, 1.442695
    %v846 = vpow.pop %v845
    %v847 = vmul.f32 %v822, 1.442695
    %v848 = vpow.pop %v847
    %v849 = vmul.f32 %v823, 1.442695
    %v850 = vpow.pop %v849
    %v851 = vmul.f32 %v824, 1.442695
    %v852 = vpow.pop %v851
    %v853 = vmul.f32 %v825, 1.442695
    %v854 = vpow.pop %v853
    %v855 = vmul.f32 %v826, 1.442695
    %v856 = vpow.pop %v855
    %v857 = vmul.f32 %v827, 1.442695
    %v858 = vpow.pop %v857
    %v859 = vmul.f32 %v828, 1.442695
    %v860 = vpow.pop %v859
    %v861 = vadd.f32 %v830, 1.0
    %v862 = vadd.f32 %v832, 1.0
    %v863 = vadd.f32 %v834, 1.0
    %v864 = vadd.f32 %v836, 1.0
    %v865 = vadd.f32 %v838, 1.0
    %v866 = vadd.f32 %v840, 1.0
    %v867 = vadd.f32 %v842, 1.0
    %v868 = vadd.f32 %v844, 1.0
    %v869 = vadd.f32 %v846, 1.0
    %v870 = vadd.f32 %v848, 1.0
    %v871 = vadd.f32 %v850, 1.0
    %v872 = vadd.f32 %v852, 1.0
    %v873 = vadd.f32 %v854, 1.0
    %v874 = vadd.f32 %v856, 1.0
    %v875 = vadd.f32 %v858, 1.0
    %v876 = vadd.f32 %v860, 1.0
    %v877 = vrcp.pop %v861
    %v878 = vmul.f32 1.0, %v877
    %v879 = vrcp.pop %v862
    %v880 = vmul.f32 1.0, %v879
    %v881 = vrcp.pop %v863
    %v882 = vmul.f32 1.0, %v881
    %v883 = vrcp.pop %v864
    %v884 = vmul.f32 1.0, %v883
    %v885 = vrcp.pop %v865
    %v886 = vmul.f32 1.0, %v885
    %v887 = vrcp.pop %v866
    %v888 = vmul.f32 1.0, %v887
    %v889 = vrcp.pop %v867
    %v890 = vmul.f32 1.0, %v889
    %v891 = vrcp.pop %v868
    %v892 = vmul.f32 1.0, %v891
    %v893 = vrcp.pop %v869
    %v894 = vmul.f32 1.0, %v893
    %v895 = vrcp.pop %v870
    %v896 = vmul.f32 1.0, %v895
    %v897 = vrcp.pop %v871
    %v898 = vmul.f32 1.0, %v897
    %v899 = vrcp.pop %v872
    %v900 = vmul.f32 1.0, %v899
    %v901 = vrcp.pop %v873
    %v902 = vmul.f32 1.0, %v901
    %v903 = vrcp.pop %v874
    %v904 = vmul.f32 1.0, %v903
    %v905 = vrcp.pop %v875
    %v906 = vmul.f32 1.0, %v905
    %v907 = vrcp.pop %v876
    %v908 = vmul.f32 1.0, %v907
    %910 = vrot.lane.b32.xlu0 %v796, 64
    %v911 = vpop.permute.xlu0 %910
    %v913 = vmul.f32 %v878, %v911
    %v914 = vmul.f32 %v880, %v911
    %v915 = vmul.f32 %v882, %v911
    %v916 = vmul.f32 %v884, %v911
    %v917 = vmul.f32 %v886, %v911
    %v918 = vmul.f32 %v888, %v911
    %v919 = vmul.f32 %v890, %v911
    %v920 = vmul.f32 %v892, %v911
    %v921 = vmul.f32 %v894, %v911
    %v922 = vmul.f32 %v896, %v911
    %v923 = vmul.f32 %v898, %v911
    %v924 = vmul.f32 %v900, %v911
    %v925 = vmul.f32 %v902, %v911
    %v926 = vmul.f32 %v904, %v911
    %v927 = vmul.f32 %v906, %v911
    %v928 = vmul.f32 %v908, %v911
    %945 = vrot.lane.b32.xlu0 %v913, 64
    %v946 = vpop.permute.xlu0 %945
    %947 = vrot.lane.b32.xlu0 %v914, 64
    %v948 = vpop.permute.xlu0 %947
    %949 = vrot.lane.b32.xlu0 %v915, 64
    %v950 = vpop.permute.xlu0 %949
    %951 = vrot.lane.b32.xlu0 %v916, 64
    %v952 = vpop.permute.xlu0 %951
    %953 = vrot.lane.b32.xlu0 %v917, 64
    %v954 = vpop.permute.xlu0 %953
    %955 = vrot.lane.b32.xlu0 %v918, 64
    %v956 = vpop.permute.xlu0 %955
    %957 = vrot.lane.b32.xlu0 %v919, 64
    %v958 = vpop.permute.xlu0 %957
    %959 = vrot.lane.b32.xlu0 %v920, 64
    %v960 = vpop.permute.xlu0 %959
    %961 = vrot.lane.b32.xlu0 %v921, 64
    %v962 = vpop.permute.xlu0 %961
    %963 = vrot.lane.b32.xlu0 %v922, 64
    %v964 = vpop.permute.xlu0 %963
    %965 = vrot.lane.b32.xlu0 %v923, 64
    %v966 = vpop.permute.xlu0 %965
    %967 = vrot.lane.b32.xlu0 %v924, 64
    %v968 = vpop.permute.xlu0 %967
    %969 = vrot.lane.b32.xlu0 %v925, 64
    %v970 = vpop.permute.xlu0 %969
    %971 = vrot.lane.b32.xlu0 %v926, 64
    %v972 = vpop.permute.xlu0 %971
    %973 = vrot.lane.b32.xlu0 %v927, 64
    %v974 = vpop.permute.xlu0 %973
    %975 = vrot.lane.b32.xlu0 %v928, 64
    %v976 = vpop.permute.xlu0 %975
    %v993 = vadd.f32 %v637, %v946
    %v994 = vadd.f32 %v642, %v948
    %v995 = vadd.f32 %v647, %v950
    %v996 = vadd.f32 %v652, %v952
    %v997 = vadd.f32 %v657, %v954
    %v998 = vadd.f32 %v662, %v956
    %v999 = vadd.f32 %v667, %v958
    %v1000 = vadd.f32 %v672, %v960
    %v1001 = vadd.f32 %v677, %v962
    %v1002 = vadd.f32 %v682, %v964
    %v1003 = vadd.f32 %v687, %v966
    %v1004 = vadd.f32 %v692, %v968
    %v1005 = vadd.f32 %v697, %v970
    %v1006 = vadd.f32 %v702, %v972
    %v1007 = vadd.f32 %v707, %v974
    %v1008 = vadd.f32 %v712, %v976
    %v1009 = vtanh.pop %v993
    %v1010 = vtanh.pop %v994
    %v1011 = vtanh.pop %v995
    %v1012 = vtanh.pop %v996
    %v1013 = vtanh.pop %v997
    %v1014 = vtanh.pop %v998
    %v1015 = vtanh.pop %v999
    %v1016 = vtanh.pop %v1000
    %v1017 = vtanh.pop %v1001
    %v1018 = vtanh.pop %v1002
    %v1019 = vtanh.pop %v1003
    %v1020 = vtanh.pop %v1004
    %v1021 = vtanh.pop %v1005
    %v1022 = vtanh.pop %v1006
    %v1023 = vtanh.pop %v1007
    %v1024 = vtanh.pop %v1008
    %v1025 = vsub.f32 1.0, %v878
    %v1026 = vsub.f32 1.0, %v880
    %v1027 = vsub.f32 1.0, %v882
    %v1028 = vsub.f32 1.0, %v884
    %v1029 = vsub.f32 1.0, %v886
    %v1030 = vsub.f32 1.0, %v888
    %v1031 = vsub.f32 1.0, %v890
    %v1032 = vsub.f32 1.0, %v892
    %v1033 = vsub.f32 1.0, %v894
    %v1034 = vsub.f32 1.0, %v896
    %v1035 = vsub.f32 1.0, %v898
    %v1036 = vsub.f32 1.0, %v900
    %v1037 = vsub.f32 1.0, %v902
    %v1038 = vsub.f32 1.0, %v904
    %v1039 = vsub.f32 1.0, %v906
    %v1040 = vsub.f32 1.0, %v908
    %1057 = vrot.lane.b32.xlu0 %v1009, 96
    %v1058 = vpop.permute.xlu0 %1057
    %1059 = vrot.lane.b32.xlu0 %v1010, 96
    %v1060 = vpop.permute.xlu0 %1059
    %1061 = vrot.lane.b32.xlu0 %v1011, 96
    %v1062 = vpop.permute.xlu0 %1061
    %1063 = vrot.lane.b32.xlu0 %v1012, 96
    %v1064 = vpop.permute.xlu0 %1063
    %1065 = vrot.lane.b32.xlu0 %v1013, 96
    %v1066 = vpop.permute.xlu0 %1065
    %1067 = vrot.lane.b32.xlu0 %v1014, 96
    %v1068 = vpop.permute.xlu0 %1067
    %1069 = vrot.lane.b32.xlu0 %v1015, 96
    %v1070 = vpop.permute.xlu0 %1069
    %1071 = vrot.lane.b32.xlu0 %v1016, 96
    %v1072 = vpop.permute.xlu0 %1071
    %1073 = vrot.lane.b32.xlu0 %v1017, 96
    %v1074 = vpop.permute.xlu0 %1073
    %1075 = vrot.lane.b32.xlu0 %v1018, 96
    %v1076 = vpop.permute.xlu0 %1075
    %1077 = vrot.lane.b32.xlu0 %v1019, 96
    %v1078 = vpop.permute.xlu0 %1077
    %1079 = vrot.lane.b32.xlu0 %v1020, 96
    %v1080 = vpop.permute.xlu0 %1079
    %1081 = vrot.lane.b32.xlu0 %v1021, 96
    %v1082 = vpop.permute.xlu0 %1081
    %1083 = vrot.lane.b32.xlu0 %v1022, 96
    %v1084 = vpop.permute.xlu0 %1083
    %1085 = vrot.lane.b32.xlu0 %v1023, 96
    %v1086 = vpop.permute.xlu0 %1085
    %1087 = vrot.lane.b32.xlu0 %v1024, 96
    %v1088 = vpop.permute.xlu0 %1087
    %v1105 = vmul.f32 %v1025, %v1058
    %v1106 = vmul.f32 %v1026, %v1060
    %v1107 = vmul.f32 %v1027, %v1062
    %v1108 = vmul.f32 %v1028, %v1064
    %v1109 = vmul.f32 %v1029, %v1066
    %v1110 = vmul.f32 %v1030, %v1068
    %v1111 = vmul.f32 %v1031, %v1070
    %v1112 = vmul.f32 %v1032, %v1072
    %v1113 = vmul.f32 %v1033, %v1074
    %v1114 = vmul.f32 %v1034, %v1076
    %v1115 = vmul.f32 %v1035, %v1078
    %v1116 = vmul.f32 %v1036, %v1080
    %v1117 = vmul.f32 %v1037, %v1082
    %v1118 = vmul.f32 %v1038, %v1084
    %v1119 = vmul.f32 %v1039, %v1086
    %v1120 = vmul.f32 %v1040, %v1088
    %v1121 = vlaneseq
    %v1122 = vshrl.u32 %v1121, 7
    %v1123 = vsub.s32 0, %v1122
    %v1124 = vrot.slane %v478, %v1123
    %1126 = vrot.lane.b32.xlu0 %v1124, 32
    %v1127 = vpop.permute.xlu0 %1126
    %v1129 = vmul.f32 %v878, %v1127
    %v1130 = vmul.f32 %v880, %v1127
    %v1131 = vmul.f32 %v882, %v1127
    %v1132 = vmul.f32 %v884, %v1127
    %v1133 = vmul.f32 %v886, %v1127
    %v1134 = vmul.f32 %v888, %v1127
    %v1135 = vmul.f32 %v890, %v1127
    %v1136 = vmul.f32 %v892, %v1127
    %v1137 = vmul.f32 %v894, %v1127
    %v1138 = vmul.f32 %v896, %v1127
    %v1139 = vmul.f32 %v898, %v1127
    %v1140 = vmul.f32 %v900, %v1127
    %v1141 = vmul.f32 %v902, %v1127
    %v1142 = vmul.f32 %v904, %v1127
    %v1143 = vmul.f32 %v906, %v1127
    %v1144 = vmul.f32 %v908, %v1127
    %v1145 = vadd.f32 %v1105, %v1129
    %v1146 = vadd.f32 %v1106, %v1130
    %v1147 = vadd.f32 %v1107, %v1131
    %v1148 = vadd.f32 %v1108, %v1132
    %v1149 = vadd.f32 %v1109, %v1133
    %v1150 = vadd.f32 %v1110, %v1134
    %v1151 = vadd.f32 %v1111, %v1135
    %v1152 = vadd.f32 %v1112, %v1136
    %v1153 = vadd.f32 %v1113, %v1137
    %v1154 = vadd.f32 %v1114, %v1138
    %v1155 = vadd.f32 %v1115, %v1139
    %v1156 = vadd.f32 %v1116, %v1140
    %v1157 = vadd.f32 %v1117, %v1141
    %v1158 = vadd.f32 %v1118, %v1142
    %v1159 = vadd.f32 %v1119, %v1143
    %v1160 = vadd.f32 %v1120, %v1144
    %v1161 = vld [vmem:[#allocation15] sm:$0xff]
    %v1162 = vld [vmem:[#allocation15 + $0x8] sm:$0xff]
    %v1163 = vld [vmem:[#allocation15 + $0x10] sm:$0xff]
    %v1164 = vld [vmem:[#allocation15 + $0x18] sm:$0xff]
    %v1165 = vld [vmem:[#allocation17] sm:$0x1]
    %v1167 = vlaneseq
    %v1168 = vshrl.u32 %v1167, 7
    %v1169 = vsub.s32 0, %v1168
    %v1170 = vrot.slane %v1165, %v1169
    %1188 = vrot.lane.b32.xlu0 %v1145, 96
    %v1189 = vpop.permute.xlu0 %1188
    %1190 = vrot.lane.b32.xlu0 %v1146, 96
    %v1191 = vpop.permute.xlu0 %1190
    %1192 = vrot.lane.b32.xlu0 %v1147, 96
    %v1193 = vpop.permute.xlu0 %1192
    %1194 = vrot.lane.b32.xlu0 %v1148, 96
    %v1195 = vpop.permute.xlu0 %1194
    %1196 = vrot.lane.b32.xlu0 %v1149, 96
    %v1197 = vpop.permute.xlu0 %1196
    %1198 = vrot.lane.b32.xlu0 %v1150, 96
    %v1199 = vpop.permute.xlu0 %1198
    %1200 = vrot.lane.b32.xlu0 %v1151, 96
    %v1201 = vpop.permute.xlu0 %1200
    %1202 = vrot.lane.b32.xlu0 %v1152, 96
    %v1203 = vpop.permute.xlu0 %1202
    %1204 = vrot.lane.b32.xlu0 %v1153, 96
    %v1205 = vpop.permute.xlu0 %1204
    %1206 = vrot.lane.b32.xlu0 %v1154, 96
    %v1207 = vpop.permute.xlu0 %1206
    %1208 = vrot.lane.b32.xlu0 %v1155, 96
    %v1209 = vpop.permute.xlu0 %1208
    %1210 = vrot.lane.b32.xlu0 %v1156, 96
    %v1211 = vpop.permute.xlu0 %1210
    %1212 = vrot.lane.b32.xlu0 %v1157, 96
    %v1213 = vpop.permute.xlu0 %1212
    %1214 = vrot.lane.b32.xlu0 %v1158, 96
    %v1215 = vpop.permute.xlu0 %1214
    %1216 = vrot.lane.b32.xlu0 %v1159, 96
    %v1217 = vpop.permute.xlu0 %1216
    %1218 = vrot.lane.b32.xlu0 %v1160, 96
    %v1219 = vpop.permute.xlu0 %1218
    %v1220 = vsel %vm187, %v1189, 0
    %v1222 = vsel %vm187, %v1191, 0
    %v1224 = vsel %vm187, %v1193, 0
    %v1226 = vsel %vm187, %v1195, 0
    %v1228 = vsel %vm187, %v1197, 0
    %v1230 = vsel %vm187, %v1199, 0
    %v1232 = vsel %vm187, %v1201, 0
    %v1234 = vsel %vm187, %v1203, 0
    %v1236 = vsel %vm187, %v1205, 0
    %v1238 = vsel %vm187, %v1207, 0
    %v1240 = vsel %vm187, %v1209, 0
    %v1242 = vsel %vm187, %v1211, 0
    %v1244 = vsel %vm187, %v1213, 0
    %v1246 = vsel %vm187, %v1215, 0
    %v1248 = vsel %vm187, %v1217, 0
    %v1250 = vsel %vm187, %v1219, 0
    %1252 = vmatprep.subr.mxu0 0.0
    %1253 = vmatpush1.msra.mxu0 %v1161
    %1254 = vmatprep.subr.mxu0 0.0
    %1255 = vmatpush1.msra.mxu0 %v1162
    %1256 = vmatprep.subr.mxu0 0.0
    %1257 = vmatpush1.msra.mxu0 %v1163
    %1258 = vmatprep.subr.mxu0 0.0
    %1259 = vmatpush1.msra.mxu0 %v1164
    %1260 = vmatprep.subr.mxu0 0.0
    %1261 = vmatpush1.msra.mxu0 0.0
    %1262 = vmatprep.subr.mxu0 0.0
    %1263 = vmatpush1.msra.mxu0 0.0
    %1264 = vmatprep.subr.mxu0 0.0
    %1265 = vmatpush1.msra.mxu0 0.0
    %1266 = vmatprep.subr.mxu0 0.0
    %1267 = vmatpush1.msra.mxu0 0.0
    %1268 = vmatprep.subr.mxu0 0.0
    %1269 = vmatpush1.msra.mxu0 0.0
    %1270 = vmatprep.subr.mxu0 0.0
    %1271 = vmatpush1.msra.mxu0 0.0
    %1272 = vmatprep.subr.mxu0 0.0
    %1273 = vmatpush1.msra.mxu0 0.0
    %1274 = vmatprep.subr.mxu0 0.0
    %1275 = vmatpush1.msra.mxu0 0.0
    %1276 = vmatprep.subr.mxu0 0.0
    %1277 = vmatpush1.msra.mxu0 0.0
    %1278 = vmatprep.subr.mxu0 0.0
    %1279 = vmatpush1.msra.mxu0 0.0
    %1280 = vmatprep.subr.mxu0 0.0
    %1281 = vmatpush1.msra.mxu0 0.0
    %1282 = vmatprep.subr.mxu0 0.0
    %1283 = vmatpush1.msra.mxu0 0.0
    %1284 = vmatprep.subr.mxu0 0.0
    %1285 = vmatpush1.msra.mxu0 0.0
    %1286 = vmatprep.subr.mxu0 0.0
    %1287 = vmatpush1.msra.mxu0 0.0
    %1288 = vmatprep.subr.mxu0 0.0
    %1289 = vmatpush1.msra.mxu0 0.0
    %1290 = vmatprep.subr.mxu0 0.0
    %1291 = vmatpush1.msra.mxu0 0.0
    %1292 = vmatprep.subr.mxu0 0.0
    %1293 = vmatpush1.msra.mxu0 0.0
    %1294 = vmatprep.subr.mxu0 0.0
    %1295 = vmatpush1.msra.mxu0 0.0
    %1296 = vmatprep.subr.mxu0 0.0
    %1297 = vmatpush1.msra.mxu0 0.0
    %1298 = vmatprep.subr.mxu0 0.0
    %1299 = vmatpush1.msra.mxu0 0.0
    %1300 = vmatprep.subr.mxu0 0.0
    %1301 = vmatpush1.msra.mxu0 0.0
    %1302 = vmatprep.subr.mxu0 0.0
    %1303 = vmatpush1.msra.mxu0 0.0
    %1304 = vmatprep.subr.mxu0 0.0
    %1305 = vmatpush1.msra.mxu0 0.0
    %1306 = vmatprep.subr.mxu0 0.0
    %1307 = vmatpush1.msra.mxu0 0.0
    %1308 = vmatprep.subr.mxu0 0.0
    %1309 = vmatpush1.msra.mxu0 0.0
    %1310 = vmatprep.subr.mxu0 0.0
    %1311 = vmatpush1.msra.mxu0 0.0
    %1312 = vmatprep.subr.mxu0 0.0
    %1313 = vmatpush1.msra.mxu0 0.0
    %1314 = vmatprep.subr.mxu0 0.0
    %1315 = vmatpush1.msra.mxu0 0.0
    %1316 = vmatprep.mubr.f32.mxu0 0.0
    %1317 = vmatmul.mubr.f32.gmra.mrb[0].mxu0 %v1220
    %v1318 = vpop.f32.mrb[0].mxu0
    %v1319 = vadd.f32 %v1170, %v1318
    %v1320 = vpop.f32.mrb[0].mxu0
    %1321 = vmatprep.mubr.f32.mxu0 0.0
    %1322 = vmatmul.mubr.f32.gmra.mrb[0].mxu0 %v1222
    %v1323 = vpop.f32.mrb[0].mxu0
    %v1324 = vadd.f32 %v1170, %v1323
    %v1325 = vpop.f32.mrb[0].mxu0
    %1326 = vmatprep.mubr.f32.mxu0 0.0
    %1327 = vmatmul.mubr.f32.gmra.mrb[0].mxu0 %v1224
    %v1328 = vpop.f32.mrb[0].mxu0
    %v1329 = vadd.f32 %v1170, %v1328
    %v1330 = vpop.f32.mrb[0].mxu0
    %1331 = vmatprep.mubr.f32.mxu0 0.0
    %1332 = vmatmul.mubr.f32.gmra.mrb[0].mxu0 %v1226
    %v1333 = vpop.f32.mrb[0].mxu0
    %v1334 = vadd.f32 %v1170, %v1333
    %v1335 = vpop.f32.mrb[0].mxu0
    %1336 = vmatprep.mubr.f32.mxu0 0.0
    %1337 = vmatmul.mubr.f32.gmra.mrb[0].mxu0 %v1228
    %v1338 = vpop.f32.mrb[0].mxu0
    %v1339 = vadd.f32 %v1170, %v1338
    %v1340 = vpop.f32.mrb[0].mxu0
    %1341 = vmatprep.mubr.f32.mxu0 0.0
    %1342 = vmatmul.mubr.f32.gmra.mrb[0].mxu0 %v1230
    %v1343 = vpop.f32.mrb[0].mxu0
    %v1344 = vadd.f32 %v1170, %v1343
    %v1345 = vpop.f32.mrb[0].mxu0
    %1346 = vmatprep.mubr.f32.mxu0 0.0
    %1347 = vmatmul.mubr.f32.gmra.mrb[0].mxu0 %v1232
    %v1348 = vpop.f32.mrb[0].mxu0
    %v1349 = vadd.f32 %v1170, %v1348
    %v1350 = vpop.f32.mrb[0].mxu0
    %1351 = vmatprep.mubr.f32.mxu0 0.0
    %1352 = vmatmul.mubr.f32.gmra.mrb[0].mxu0 %v1234
    %v1353 = vpop.f32.mrb[0].mxu0
    %v1354 = vadd.f32 %v1170, %v1353
    %v1355 = vpop.f32.mrb[0].mxu0
    %1356 = vmatprep.mubr.f32.mxu0 0.0
    %1357 = vmatmul.mubr.f32.gmra.mrb[0].mxu0 %v1236
    %v1358 = vpop.f32.mrb[0].mxu0
    %v1359 = vadd.f32 %v1170, %v1358
    %v1360 = vpop.f32.mrb[0].mxu0
    %1361 = vmatprep.mubr.f32.mxu0 0.0
    %1362 = vmatmul.mubr.f32.gmra.mrb[0].mxu0 %v1238
    %v1363 = vpop.f32.mrb[0].mxu0
    %v1364 = vadd.f32 %v1170, %v1363
    %v1365 = vpop.f32.mrb[0].mxu0
    %1366 = vmatprep.mubr.f32.mxu0 0.0
    %1367 = vmatmul.mubr.f32.gmra.mrb[0].mxu0 %v1240
    %v1368 = vpop.f32.mrb[0].mxu0
    %v1369 = vadd.f32 %v1170, %v1368
    %v1370 = vpop.f32.mrb[0].mxu0
    %1371 = vmatprep.mubr.f32.mxu0 0.0
    %1372 = vmatmul.mubr.f32.gmra.mrb[0].mxu0 %v1242
    %v1373 = vpop.f32.mrb[0].mxu0
    %v1374 = vadd.f32 %v1170, %v1373
    %v1375 = vpop.f32.mrb[0].mxu0
    %1376 = vmatprep.mubr.f32.mxu0 0.0
    %1377 = vmatmul.mubr.f32.gmra.mrb[0].mxu0 %v1244
    %v1378 = vpop.f32.mrb[0].mxu0
    %v1379 = vadd.f32 %v1170, %v1378
    %v1380 = vpop.f32.mrb[0].mxu0
    %1381 = vmatprep.mubr.f32.mxu0 0.0
    %1382 = vmatmul.mubr.f32.gmra.mrb[0].mxu0 %v1246
    %v1383 = vpop.f32.mrb[0].mxu0
    %v1384 = vadd.f32 %v1170, %v1383
    %v1385 = vpop.f32.mrb[0].mxu0
    %1386 = vmatprep.mubr.f32.mxu0 0.0
    %1387 = vmatmul.mubr.f32.gmra.mrb[0].mxu0 %v1248
    %v1388 = vpop.f32.mrb[0].mxu0
    %v1389 = vadd.f32 %v1170, %v1388
    %v1390 = vpop.f32.mrb[0].mxu0
    %1391 = vmatprep.mubr.f32.mxu0 0.0
    %1392 = vmatmul.mubr.f32.gmra.mrb[0].mxu0 %v1250
    %v1393 = vpop.f32.mrb[0].mxu0
    %v1394 = vadd.f32 %v1170, %v1393
    %v1395 = vpop.f32.mrb[0].mxu0
    %1396 = vdwg.mxu0
    %v1397 = vlaneseq
    %v1398 = vand.u32 %v1397, 127
    %1399 = vmax.xlane.f32.xlu0 %v1319
    %v1400 = vpop.xlane.xlu0 %1399
    %1401 = vmax.xlane.f32.xlu0 %v1324
    %v1402 = vpop.xlane.xlu0 %1401
    %1403 = vmax.xlane.f32.xlu0 %v1329
    %v1404 = vpop.xlane.xlu0 %1403
    %1405 = vmax.xlane.f32.xlu0 %v1334
    %v1406 = vpop.xlane.xlu0 %1405
    %1407 = vmax.xlane.f32.xlu0 %v1339
    %v1408 = vpop.xlane.xlu0 %1407
    %1409 = vmax.xlane.f32.xlu0 %v1344
    %v1410 = vpop.xlane.xlu0 %1409
    %1411 = vmax.xlane.f32.xlu0 %v1349
    %v1412 = vpop.xlane.xlu0 %1411
    %1413 = vmax.xlane.f32.xlu0 %v1354
    %v1414 = vpop.xlane.xlu0 %1413
    %1415 = vmax.xlane.f32.xlu0 %v1359
    %v1416 = vpop.xlane.xlu0 %1415
    %1417 = vmax.xlane.f32.xlu0 %v1364
    %v1418 = vpop.xlane.xlu0 %1417
    %1419 = vmax.xlane.f32.xlu0 %v1369
    %v1420 = vpop.xlane.xlu0 %1419
    %1421 = vmax.xlane.f32.xlu0 %v1374
    %v1422 = vpop.xlane.xlu0 %1421
    %1423 = vmax.xlane.f32.xlu0 %v1379
    %v1424 = vpop.xlane.xlu0 %1423
    %1425 = vmax.xlane.f32.xlu0 %v1384
    %v1426 = vpop.xlane.xlu0 %1425
    %1427 = vmax.xlane.f32.xlu0 %v1389
    %v1428 = vpop.xlane.xlu0 %1427
    %1429 = vmax.xlane.f32.xlu0 %v1394
    %v1430 = vpop.xlane.xlu0 %1429
    %vm1431 = vcmp.ge.f32.partialorder %v1319, %v1400
    %vm1432 = vcmp.ge.f32.partialorder %v1324, %v1402
    %vm1433 = vcmp.ge.f32.partialorder %v1329, %v1404
    %vm1434 = vcmp.ge.f32.partialorder %v1334, %v1406
    %vm1435 = vcmp.ge.f32.partialorder %v1339, %v1408
    %vm1436 = vcmp.ge.f32.partialorder %v1344, %v1410
    %vm1437 = vcmp.ge.f32.partialorder %v1349, %v1412
    %vm1438 = vcmp.ge.f32.partialorder %v1354, %v1414
    %vm1439 = vcmp.ge.f32.partialorder %v1359, %v1416
    %vm1440 = vcmp.ge.f32.partialorder %v1364, %v1418
    %vm1441 = vcmp.ge.f32.partialorder %v1369, %v1420
    %vm1442 = vcmp.ge.f32.partialorder %v1374, %v1422
    %vm1443 = vcmp.ge.f32.partialorder %v1379, %v1424
    %vm1444 = vcmp.ge.f32.partialorder %v1384, %v1426
    %vm1445 = vcmp.ge.f32.partialorder %v1389, %v1428
    %vm1446 = vcmp.ge.f32.partialorder %v1394, %v1430
    %v1447 = vsel %vm1431, %v1398, 128
    %v1448 = vsel %vm1432, %v1398, 128
    %v1449 = vsel %vm1433, %v1398, 128
    %v1450 = vsel %vm1434, %v1398, 128
    %v1451 = vsel %vm1435, %v1398, 128
    %v1452 = vsel %vm1436, %v1398, 128
    %v1453 = vsel %vm1437, %v1398, 128
    %v1454 = vsel %vm1438, %v1398, 128
    %v1455 = vsel %vm1439, %v1398, 128
    %v1456 = vsel %vm1440, %v1398, 128
    %v1457 = vsel %vm1441, %v1398, 128
    %v1458 = vsel %vm1442, %v1398, 128
    %v1459 = vsel %vm1443, %v1398, 128
    %v1460 = vsel %vm1444, %v1398, 128
    %v1461 = vsel %vm1445, %v1398, 128
    %v1462 = vsel %vm1446, %v1398, 128
    %v1463 = vand.u32 %v1447, 65535
    %v1464 = vshra.s32 %v1447, 16
    %v1465 = vcvt.s32.f32 %v1463
    %v1466 = vcvt.s32.f32 %v1464
    %1467 = vmin.xlane.f32.xlu0 %v1466
    %v1468 = vpop.xlane.xlu0 %1467
    %vm1469 = vcmp.eq.f32.partialorder %v1466, %v1468
    %v1470 = vsel %vm1469, %v1465, inf
    %1471 = vmin.xlane.f32.xlu0 %v1470
    %v1472 = vpop.xlane.xlu0 %1471
    %v1473 = vcvt.f32.s32 %v1472
    %v1474 = vcvt.f32.s32 %v1468
    %v1475 = vshll.u32 %v1474, 16
    %v1476 = vadd.s32 %v1475, %v1473
    %v1477 = vand.u32 %v1448, 65535
    %v1478 = vshra.s32 %v1448, 16
    %v1479 = vcvt.s32.f32 %v1477
    %v1480 = vcvt.s32.f32 %v1478
    %1481 = vmin.xlane.f32.xlu0 %v1480
    %v1482 = vpop.xlane.xlu0 %1481
    %vm1483 = vcmp.eq.f32.partialorder %v1480, %v1482
    %v1484 = vsel %vm1483, %v1479, inf
    %1485 = vmin.xlane.f32.xlu0 %v1484
    %v1486 = vpop.xlane.xlu0 %1485
    %v1487 = vcvt.f32.s32 %v1486
    %v1488 = vcvt.f32.s32 %v1482
    %v1489 = vshll.u32 %v1488, 16
    %v1490 = vadd.s32 %v1489, %v1487
    %v1491 = vand.u32 %v1449, 65535
    %v1492 = vshra.s32 %v1449, 16
    %v1493 = vcvt.s32.f32 %v1491
    %v1494 = vcvt.s32.f32 %v1492
    %1495 = vmin.xlane.f32.xlu0 %v1494
    %v1496 = vpop.xlane.xlu0 %1495
    %vm1497 = vcmp.eq.f32.partialorder %v1494, %v1496
    %v1498 = vsel %vm1497, %v1493, inf
    %1499 = vmin.xlane.f32.xlu0 %v1498
    %v1500 = vpop.xlane.xlu0 %1499
    %v1501 = vcvt.f32.s32 %v1500
    %v1502 = vcvt.f32.s32 %v1496
    %v1503 = vshll.u32 %v1502, 16
    %v1504 = vadd.s32 %v1503, %v1501
    %v1505 = vand.u32 %v1450, 65535
    %v1506 = vshra.s32 %v1450, 16
    %v1507 = vcvt.s32.f32 %v1505
    %v1508 = vcvt.s32.f32 %v1506
    %1509 = vmin.xlane.f32.xlu0 %v1508
    %v1510 = vpop.xlane.xlu0 %1509
    %vm1511 = vcmp.eq.f32.partialorder %v1508, %v1510
    %v1512 = vsel %vm1511, %v1507, inf
    %1513 = vmin.xlane.f32.xlu0 %v1512
    %v1514 = vpop.xlane.xlu0 %1513
    %v1515 = vcvt.f32.s32 %v1514
    %v1516 = vcvt.f32.s32 %v1510
    %v1517 = vshll.u32 %v1516, 16
    %v1518 = vadd.s32 %v1517, %v1515
    %v1519 = vand.u32 %v1451, 65535
    %v1520 = vshra.s32 %v1451, 16
    %v1521 = vcvt.s32.f32 %v1519
    %v1522 = vcvt.s32.f32 %v1520
    %1523 = vmin.xlane.f32.xlu0 %v1522
    %v1524 = vpop.xlane.xlu0 %1523
    %vm1525 = vcmp.eq.f32.partialorder %v1522, %v1524
    %v1526 = vsel %vm1525, %v1521, inf
    %1527 = vmin.xlane.f32.xlu0 %v1526
    %v1528 = vpop.xlane.xlu0 %1527
    %v1529 = vcvt.f32.s32 %v1528
    %v1530 = vcvt.f32.s32 %v1524
    %v1531 = vshll.u32 %v1530, 16
    %v1532 = vadd.s32 %v1531, %v1529
    %v1533 = vand.u32 %v1452, 65535
    %v1534 = vshra.s32 %v1452, 16
    %v1535 = vcvt.s32.f32 %v1533
    %v1536 = vcvt.s32.f32 %v1534
    %1537 = vmin.xlane.f32.xlu0 %v1536
    %v1538 = vpop.xlane.xlu0 %1537
    %vm1539 = vcmp.eq.f32.partialorder %v1536, %v1538
    %v1540 = vsel %vm1539, %v1535, inf
    %1541 = vmin.xlane.f32.xlu0 %v1540
    %v1542 = vpop.xlane.xlu0 %1541
    %v1543 = vcvt.f32.s32 %v1542
    %v1544 = vcvt.f32.s32 %v1538
    %v1545 = vshll.u32 %v1544, 16
    %v1546 = vadd.s32 %v1545, %v1543
    %v1547 = vand.u32 %v1453, 65535
    %v1548 = vshra.s32 %v1453, 16
    %v1549 = vcvt.s32.f32 %v1547
    %v1550 = vcvt.s32.f32 %v1548
    %1551 = vmin.xlane.f32.xlu0 %v1550
    %v1552 = vpop.xlane.xlu0 %1551
    %vm1553 = vcmp.eq.f32.partialorder %v1550, %v1552
    %v1554 = vsel %vm1553, %v1549, inf
    %1555 = vmin.xlane.f32.xlu0 %v1554
    %v1556 = vpop.xlane.xlu0 %1555
    %v1557 = vcvt.f32.s32 %v1556
    %v1558 = vcvt.f32.s32 %v1552
    %v1559 = vshll.u32 %v1558, 16
    %v1560 = vadd.s32 %v1559, %v1557
    %v1561 = vand.u32 %v1454, 65535
    %v1562 = vshra.s32 %v1454, 16
    %v1563 = vcvt.s32.f32 %v1561
    %v1564 = vcvt.s32.f32 %v1562
    %1565 = vmin.xlane.f32.xlu0 %v1564
    %v1566 = vpop.xlane.xlu0 %1565
    %vm1567 = vcmp.eq.f32.partialorder %v1564, %v1566
    %v1568 = vsel %vm1567, %v1563, inf
    %1569 = vmin.xlane.f32.xlu0 %v1568
    %v1570 = vpop.xlane.xlu0 %1569
    %v1571 = vcvt.f32.s32 %v1570
    %v1572 = vcvt.f32.s32 %v1566
    %v1573 = vshll.u32 %v1572, 16
    %v1574 = vadd.s32 %v1573, %v1571
    %v1575 = vand.u32 %v1455, 65535
    %v1576 = vshra.s32 %v1455, 16
    %v1577 = vcvt.s32.f32 %v1575
    %v1578 = vcvt.s32.f32 %v1576
    %1579 = vmin.xlane.f32.xlu0 %v1578
    %v1580 = vpop.xlane.xlu0 %1579
    %vm1581 = vcmp.eq.f32.partialorder %v1578, %v1580
    %v1582 = vsel %vm1581, %v1577, inf
    %1583 = vmin.xlane.f32.xlu0 %v1582
    %v1584 = vpop.xlane.xlu0 %1583
    %v1585 = vcvt.f32.s32 %v1584
    %v1586 = vcvt.f32.s32 %v1580
    %v1587 = vshll.u32 %v1586, 16
    %v1588 = vadd.s32 %v1587, %v1585
    %v1589 = vand.u32 %v1456, 65535
    %v1590 = vshra.s32 %v1456, 16
    %v1591 = vcvt.s32.f32 %v1589
    %v1592 = vcvt.s32.f32 %v1590
    %1593 = vmin.xlane.f32.xlu0 %v1592
    %v1594 = vpop.xlane.xlu0 %1593
    %vm1595 = vcmp.eq.f32.partialorder %v1592, %v1594
    %v1596 = vsel %vm1595, %v1591, inf
    %1597 = vmin.xlane.f32.xlu0 %v1596
    %v1598 = vpop.xlane.xlu0 %1597
    %v1599 = vcvt.f32.s32 %v1598
    %v1600 = vcvt.f32.s32 %v1594
    %v1601 = vshll.u32 %v1600, 16
    %v1602 = vadd.s32 %v1601, %v1599
    %v1603 = vand.u32 %v1457, 65535
    %v1604 = vshra.s32 %v1457, 16
    %v1605 = vcvt.s32.f32 %v1603
    %v1606 = vcvt.s32.f32 %v1604
    %1607 = vmin.xlane.f32.xlu0 %v1606
    %v1608 = vpop.xlane.xlu0 %1607
    %vm1609 = vcmp.eq.f32.partialorder %v1606, %v1608
    %v1610 = vsel %vm1609, %v1605, inf
    %1611 = vmin.xlane.f32.xlu0 %v1610
    %v1612 = vpop.xlane.xlu0 %1611
    %v1613 = vcvt.f32.s32 %v1612
    %v1614 = vcvt.f32.s32 %v1608
    %v1615 = vshll.u32 %v1614, 16
    %v1616 = vadd.s32 %v1615, %v1613
    %v1617 = vand.u32 %v1458, 65535
    %v1618 = vshra.s32 %v1458, 16
    %v1619 = vcvt.s32.f32 %v1617
    %v1620 = vcvt.s32.f32 %v1618
    %1621 = vmin.xlane.f32.xlu0 %v1620
    %v1622 = vpop.xlane.xlu0 %1621
    %vm1623 = vcmp.eq.f32.partialorder %v1620, %v1622
    %v1624 = vsel %vm1623, %v1619, inf
    %1625 = vmin.xlane.f32.xlu0 %v1624
    %v1626 = vpop.xlane.xlu0 %1625
    %v1627 = vcvt.f32.s32 %v1626
    %v1628 = vcvt.f32.s32 %v1622
    %v1629 = vshll.u32 %v1628, 16
    %v1630 = vadd.s32 %v1629, %v1627
    %v1631 = vand.u32 %v1459, 65535
    %v1632 = vshra.s32 %v1459, 16
    %v1633 = vcvt.s32.f32 %v1631
    %v1634 = vcvt.s32.f32 %v1632
    %1635 = vmin.xlane.f32.xlu0 %v1634
    %v1636 = vpop.xlane.xlu0 %1635
    %vm1637 = vcmp.eq.f32.partialorder %v1634, %v1636
    %v1638 = vsel %vm1637, %v1633, inf
    %1639 = vmin.xlane.f32.xlu0 %v1638
    %v1640 = vpop.xlane.xlu0 %1639
    %v1641 = vcvt.f32.s32 %v1640
    %v1642 = vcvt.f32.s32 %v1636
    %v1643 = vshll.u32 %v1642, 16
    %v1644 = vadd.s32 %v1643, %v1641
    %v1645 = vand.u32 %v1460, 65535
    %v1646 = vshra.s32 %v1460, 16
    %v1647 = vcvt.s32.f32 %v1645
    %v1648 = vcvt.s32.f32 %v1646
    %1649 = vmin.xlane.f32.xlu0 %v1648
    %v1650 = vpop.xlane.xlu0 %1649
    %vm1651 = vcmp.eq.f32.partialorder %v1648, %v1650
    %v1652 = vsel %vm1651, %v1647, inf
    %1653 = vmin.xlane.f32.xlu0 %v1652
    %v1654 = vpop.xlane.xlu0 %1653
    %v1655 = vcvt.f32.s32 %v1654
    %v1656 = vcvt.f32.s32 %v1650
    %v1657 = vshll.u32 %v1656, 16
    %v1658 = vadd.s32 %v1657, %v1655
    %v1659 = vand.u32 %v1461, 65535
    %v1660 = vshra.s32 %v1461, 16
    %v1661 = vcvt.s32.f32 %v1659
    %v1662 = vcvt.s32.f32 %v1660
    %1663 = vmin.xlane.f32.xlu0 %v1662
    %v1664 = vpop.xlane.xlu0 %1663
    %vm1665 = vcmp.eq.f32.partialorder %v1662, %v1664
    %v1666 = vsel %vm1665, %v1661, inf
    %1667 = vmin.xlane.f32.xlu0 %v1666
    %v1668 = vpop.xlane.xlu0 %1667
    %v1669 = vcvt.f32.s32 %v1668
    %v1670 = vcvt.f32.s32 %v1664
    %v1671 = vshll.u32 %v1670, 16
    %v1672 = vadd.s32 %v1671, %v1669
    %v1673 = vand.u32 %v1462, 65535
    %v1674 = vshra.s32 %v1462, 16
    %v1675 = vcvt.s32.f32 %v1673
    %v1676 = vcvt.s32.f32 %v1674
    %1677 = vmin.xlane.f32.xlu0 %v1676
    %v1678 = vpop.xlane.xlu0 %1677
    %vm1679 = vcmp.eq.f32.partialorder %v1676, %v1678
    %v1680 = vsel %vm1679, %v1675, inf
    %1681 = vmin.xlane.f32.xlu0 %v1680
    %v1682 = vpop.xlane.xlu0 %1681
    %v1683 = vcvt.f32.s32 %v1682
    %v1684 = vcvt.f32.s32 %v1678
    %v1685 = vshll.u32 %v1684, 16
    %v1686 = vadd.s32 %v1685, %v1683
    %v1687 = vlaneseq
    %v1688 = vshrl.u32 %v1687, 7
    %v1689 = vadd.s32 %v1688, 8
    %v1690 = vadd.s32 %v1688, 16
    %v1691 = vadd.s32 %v1688, 24
    %v1692 = vadd.s32 %v1688, 32
    %v1693 = vadd.s32 %v1688, 40
    %v1694 = vadd.s32 %v1688, 48
    %v1695 = vadd.s32 %v1688, 56
    %v1696 = vadd.s32 %v1688, 64
    %v1697 = vadd.s32 %v1688, 72
    %v1698 = vadd.s32 %v1688, 80
    %v1699 = vadd.s32 %v1688, 88
    %v1700 = vadd.s32 %v1688, 96
    %v1701 = vadd.s32 %v1688, 104
    %v1702 = vadd.s32 %v1688, 112
    %v1703 = vadd.s32 %v1688, 120
    %s1704 = scalar_lea.smem [#allocation21], 0
    %1705 = sst [smem:[%s1704]] 0
    %vm1706 = vcmp.eq.s32.totalorder %v1688, 0
    %vm1707 = vcmp.eq.s32.totalorder %v1689, 0
    %vm1708 = vcmp.eq.s32.totalorder %v1690, 0
    %vm1709 = vcmp.eq.s32.totalorder %v1691, 0
    %vm1710 = vcmp.eq.s32.totalorder %v1692, 0
    %vm1711 = vcmp.eq.s32.totalorder %v1693, 0
    %vm1712 = vcmp.eq.s32.totalorder %v1694, 0
    %vm1713 = vcmp.eq.s32.totalorder %v1695, 0
    %vm1714 = vcmp.eq.s32.totalorder %v1696, 0
    %vm1715 = vcmp.eq.s32.totalorder %v1697, 0
    %vm1716 = vcmp.eq.s32.totalorder %v1698, 0
    %vm1717 = vcmp.eq.s32.totalorder %v1699, 0
    %vm1718 = vcmp.eq.s32.totalorder %v1700, 0
    %vm1719 = vcmp.eq.s32.totalorder %v1701, 0
    %vm1720 = vcmp.eq.s32.totalorder %v1702, 0
    %vm1721 = vcmp.eq.s32.totalorder %v1703, 0
    %v1722 = vsel %vm1706, %v1476, 0
    %v1723 = vsel %vm1707, %v1490, 0
    %v1724 = vsel %vm1708, %v1504, 0
    %v1725 = vsel %vm1709, %v1518, 0
    %v1726 = vsel %vm1710, %v1532, 0
    %v1727 = vsel %vm1711, %v1546, 0
    %v1728 = vsel %vm1712, %v1560, 0
    %v1729 = vsel %vm1713, %v1574, 0
    %v1730 = vsel %vm1714, %v1588, 0
    %v1731 = vsel %vm1715, %v1602, 0
    %v1732 = vsel %vm1716, %v1616, 0
    %v1733 = vsel %vm1717, %v1630, 0
    %v1734 = vsel %vm1718, %v1644, 0
    %v1735 = vsel %vm1719, %v1658, 0
    %v1736 = vsel %vm1720, %v1672, 0
    %v1737 = vsel %vm1721, %v1686, 0
    %v1738 = vadd.s32 %v1722, %v1726
    %v1739 = vadd.s32 %v1723, %v1727
    %v1740 = vadd.s32 %v1724, %v1728
    %v1741 = vadd.s32 %v1725, %v1729
    %v1742 = vadd.s32 %v1738, %v1730
    %v1743 = vadd.s32 %v1739, %v1731
    %v1744 = vadd.s32 %v1740, %v1732
    %v1745 = vadd.s32 %v1741, %v1733
    %v1746 = vadd.s32 %v1742, %v1734
    %v1747 = vadd.s32 %v1743, %v1735
    %v1748 = vadd.s32 %v1744, %v1736
    %v1749 = vadd.s32 %v1745, %v1737
    %v1750 = vadd.s32 %v1746, %v1747
    %v1751 = vadd.s32 %v1748, %v1749
    %v1752 = vadd.s32 %v1750, %v1751
    %v1753 = vrot.slane %v1752, 4
    %v1754 = vadd.s32 %v1752, %v1753
    %v1755 = vrot.slane %v1754, 2
    %v1756 = vadd.s32 %v1754, %v1755
    %v1757 = vrot.slane %v1756, 1
    %v1758 = vadd.s32 %v1756, %v1757
    %s1759 = vtos %v1758
    %s1760 = scalar_lea.smem [#allocation21], 1
    %1761 = sst [smem:[%s1760]] %s1759
    %p1762 = scmp.eq.s32.totalorder %s1759, 1
    %v1763 = vstv %s1759
    %vm1764 = vcmp.eq.s32.totalorder %v1688, %v1763
    %vm1765 = vcmp.eq.s32.totalorder %v1689, %v1763
    %vm1766 = vcmp.eq.s32.totalorder %v1690, %v1763
    %vm1767 = vcmp.eq.s32.totalorder %v1691, %v1763
    %vm1768 = vcmp.eq.s32.totalorder %v1692, %v1763
    %vm1769 = vcmp.eq.s32.totalorder %v1693, %v1763
    %vm1770 = vcmp.eq.s32.totalorder %v1694, %v1763
    %vm1771 = vcmp.eq.s32.totalorder %v1695, %v1763
    %vm1772 = vcmp.eq.s32.totalorder %v1696, %v1763
    %vm1773 = vcmp.eq.s32.totalorder %v1697, %v1763
    %vm1774 = vcmp.eq.s32.totalorder %v1698, %v1763
    %vm1775 = vcmp.eq.s32.totalorder %v1699, %v1763
    %vm1776 = vcmp.eq.s32.totalorder %v1700, %v1763
    %vm1777 = vcmp.eq.s32.totalorder %v1701, %v1763
    %vm1778 = vcmp.eq.s32.totalorder %v1702, %v1763
    %vm1779 = vcmp.eq.s32.totalorder %v1703, %v1763
    %v1780 = vsel %vm1764, %v1476, 0
    %v1781 = vsel %vm1765, %v1490, 0
    %v1782 = vsel %vm1766, %v1504, 0
    %v1783 = vsel %vm1767, %v1518, 0
    %v1784 = vsel %vm1768, %v1532, 0
    %v1785 = vsel %vm1769, %v1546, 0
    %v1786 = vsel %vm1770, %v1560, 0
    %v1787 = vsel %vm1771, %v1574, 0
    %v1788 = vsel %vm1772, %v1588, 0
    %v1789 = vsel %vm1773, %v1602, 0
    %v1790 = vsel %vm1774, %v1616, 0
    %v1791 = vsel %vm1775, %v1630, 0
    %v1792 = vsel %vm1776, %v1644, 0
    %v1793 = vsel %vm1777, %v1658, 0
    %v1794 = vsel %vm1778, %v1672, 0
    %v1795 = vsel %vm1779, %v1686, 0
    %v1796 = vadd.s32 %v1780, %v1784
    %v1797 = vadd.s32 %v1781, %v1785
    %v1798 = vadd.s32 %v1782, %v1786
    %v1799 = vadd.s32 %v1783, %v1787
    %v1800 = vadd.s32 %v1796, %v1788
    %v1801 = vadd.s32 %v1797, %v1789
    %v1802 = vadd.s32 %v1798, %v1790
    %v1803 = vadd.s32 %v1799, %v1791
    %v1804 = vadd.s32 %v1800, %v1792
    %v1805 = vadd.s32 %v1801, %v1793
    %v1806 = vadd.s32 %v1802, %v1794
    %v1807 = vadd.s32 %v1803, %v1795
    %v1808 = vadd.s32 %v1804, %v1805
    %v1809 = vadd.s32 %v1806, %v1807
    %v1810 = vadd.s32 %v1808, %v1809
    %v1811 = vrot.slane %v1810, 4
    %v1812 = vadd.s32 %v1810, %v1811
    %v1813 = vrot.slane %v1812, 2
    %v1814 = vadd.s32 %v1812, %v1813
    %v1815 = vrot.slane %v1814, 1
    %v1816 = vadd.s32 %v1814, %v1815
    %s1817 = vtos %v1816
    %s1818 = scalar_select %p1762, 0, %s1817
    %s1819 = scalar_lea.smem [#allocation21], 2
    %1820 = sst [smem:[%s1819]] %s1818
    %s1821 = scalar_select %p1762, 0, %s1759
    %s1822 = scalar_select %p1762, 2, 3
    %p1823 = scmp.eq.s32.totalorder %s1817, 1
    %p1824 = por %p1762, %p1823
    %s1825 = scalar_select %p1762, %s1759, %s1817
    %v1826 = vstv %s1825
    %vm1827 = vcmp.eq.s32.totalorder %v1688, %v1826
    %vm1828 = vcmp.eq.s32.totalorder %v1689, %v1826
    %vm1829 = vcmp.eq.s32.totalorder %v1690, %v1826
    %vm1830 = vcmp.eq.s32.totalorder %v1691, %v1826
    %vm1831 = vcmp.eq.s32.totalorder %v1692, %v1826
    %vm1832 = vcmp.eq.s32.totalorder %v1693, %v1826
    %vm1833 = vcmp.eq.s32.totalorder %v1694, %v1826
    %vm1834 = vcmp.eq.s32.totalorder %v1695, %v1826
    %vm1835 = vcmp.eq.s32.totalorder %v1696, %v1826
    %vm1836 = vcmp.eq.s32.totalorder %v1697, %v1826
    %vm1837 = vcmp.eq.s32.totalorder %v1698, %v1826
    %vm1838 = vcmp.eq.s32.totalorder %v1699, %v1826
    %vm1839 = vcmp.eq.s32.totalorder %v1700, %v1826
    %vm1840 = vcmp.eq.s32.totalorder %v1701, %v1826
    %vm1841 = vcmp.eq.s32.totalorder %v1702, %v1826
    %vm1842 = vcmp.eq.s32.totalorder %v1703, %v1826
    %v1843 = vsel %vm1827, %v1476, 0
    %v1844 = vsel %vm1828, %v1490, 0
    %v1845 = vsel %vm1829, %v1504, 0
    %v1846 = vsel %vm1830, %v1518, 0
    %v1847 = vsel %vm1831, %v1532, 0
    %v1848 = vsel %vm1832, %v1546, 0
    %v1849 = vsel %vm1833, %v1560, 0
    %v1850 = vsel %vm1834, %v1574, 0
    %v1851 = vsel %vm1835, %v1588, 0
    %v1852 = vsel %vm1836, %v1602, 0
    %v1853 = vsel %vm1837, %v1616, 0
    %v1854 = vsel %vm1838, %v1630, 0
    %v1855 = vsel %vm1839, %v1644, 0
    %v1856 = vsel %vm1840, %v1658, 0
    %v1857 = vsel %vm1841, %v1672, 0
    %v1858 = vsel %vm1842, %v1686, 0
    %v1859 = vadd.s32 %v1843, %v1847
    %v1860 = vadd.s32 %v1844, %v1848
    %v1861 = vadd.s32 %v1845, %v1849
    %v1862 = vadd.s32 %v1846, %v1850
    %v1863 = vadd.s32 %v1859, %v1851
    %v1864 = vadd.s32 %v1860, %v1852
    %v1865 = vadd.s32 %v1861, %v1853
    %v1866 = vadd.s32 %v1862, %v1854
    %v1867 = vadd.s32 %v1863, %v1855
    %v1868 = vadd.s32 %v1864, %v1856
    %v1869 = vadd.s32 %v1865, %v1857
    %v1870 = vadd.s32 %v1866, %v1858
    %v1871 = vadd.s32 %v1867, %v1868
    %v1872 = vadd.s32 %v1869, %v1870
    %v1873 = vadd.s32 %v1871, %v1872
    %v1874 = vrot.slane %v1873, 4
    %v1875 = vadd.s32 %v1873, %v1874
    %v1876 = vrot.slane %v1875, 2
    %v1877 = vadd.s32 %v1875, %v1876
    %v1878 = vrot.slane %v1877, 1
    %v1879 = vadd.s32 %v1877, %v1878
    %s1880 = vtos %v1879
    %s1881 = scalar_select %p1824, 0, %s1880
    %s1882 = scalar_lea.smem [#allocation21], 3
    %1883 = sst [smem:[%s1882]] %s1881
    %s1884 = scalar_select %p1824, %s1821, %s1825
    %s1885 = sadd.s32 %s1822, 1
    %s1886 = scalar_select %p1824, %s1822, %s1885
    %p1887 = scmp.eq.s32.totalorder %s1880, 1
    %p1888 = por %p1824, %p1887
    %s1889 = scalar_select %p1824, %s1825, %s1880
    %v1890 = vstv %s1889
    %vm1891 = vcmp.eq.s32.totalorder %v1688, %v1890
    %vm1892 = vcmp.eq.s32.totalorder %v1689, %v1890
    %vm1893 = vcmp.eq.s32.totalorder %v1690, %v1890
    %vm1894 = vcmp.eq.s32.totalorder %v1691, %v1890
    %vm1895 = vcmp.eq.s32.totalorder %v1692, %v1890
    %vm1896 = vcmp.eq.s32.totalorder %v1693, %v1890
    %vm1897 = vcmp.eq.s32.totalorder %v1694, %v1890
    %vm1898 = vcmp.eq.s32.totalorder %v1695, %v1890
    %vm1899 = vcmp.eq.s32.totalorder %v1696, %v1890
    %vm1900 = vcmp.eq.s32.totalorder %v1697, %v1890
    %vm1901 = vcmp.eq.s32.totalorder %v1698, %v1890
    %vm1902 = vcmp.eq.s32.totalorder %v1699, %v1890
    %vm1903 = vcmp.eq.s32.totalorder %v1700, %v1890
    %vm1904 = vcmp.eq.s32.totalorder %v1701, %v1890
    %vm1905 = vcmp.eq.s32.totalorder %v1702, %v1890
    %vm1906 = vcmp.eq.s32.totalorder %v1703, %v1890
    %v1907 = vsel %vm1891, %v1476, 0
    %v1908 = vsel %vm1892, %v1490, 0
    %v1909 = vsel %vm1893, %v1504, 0
    %v1910 = vsel %vm1894, %v1518, 0
    %v1911 = vsel %vm1895, %v1532, 0
    %v1912 = vsel %vm1896, %v1546, 0
    %v1913 = vsel %vm1897, %v1560, 0
    %v1914 = vsel %vm1898, %v1574, 0
    %v1915 = vsel %vm1899, %v1588, 0
    %v1916 = vsel %vm1900, %v1602, 0
    %v1917 = vsel %vm1901, %v1616, 0
    %v1918 = vsel %vm1902, %v1630, 0
    %v1919 = vsel %vm1903, %v1644, 0
    %v1920 = vsel %vm1904, %v1658, 0
    %v1921 = vsel %vm1905, %v1672, 0
    %v1922 = vsel %vm1906, %v1686, 0
    %v1923 = vadd.s32 %v1907, %v1911
    %v1924 = vadd.s32 %v1908, %v1912
    %v1925 = vadd.s32 %v1909, %v1913
    %v1926 = vadd.s32 %v1910, %v1914
    %v1927 = vadd.s32 %v1923, %v1915
    %v1928 = vadd.s32 %v1924, %v1916
    %v1929 = vadd.s32 %v1925, %v1917
    %v1930 = vadd.s32 %v1926, %v1918
    %v1931 = vadd.s32 %v1927, %v1919
    %v1932 = vadd.s32 %v1928, %v1920
    %v1933 = vadd.s32 %v1929, %v1921
    %v1934 = vadd.s32 %v1930, %v1922
    %v1935 = vadd.s32 %v1931, %v1932
    %v1936 = vadd.s32 %v1933, %v1934
    %v1937 = vadd.s32 %v1935, %v1936
    %v1938 = vrot.slane %v1937, 4
    %v1939 = vadd.s32 %v1937, %v1938
    %v1940 = vrot.slane %v1939, 2
    %v1941 = vadd.s32 %v1939, %v1940
    %v1942 = vrot.slane %v1941, 1
    %v1943 = vadd.s32 %v1941, %v1942
    %s1944 = vtos %v1943
    %s1945 = scalar_select %p1888, 0, %s1944
    %s1946 = scalar_lea.smem [#allocation21], 4
    %1947 = sst [smem:[%s1946]] %s1945
    %s1948 = scalar_select %p1888, %s1884, %s1889
    %s1949 = sadd.s32 %s1886, 1
    %s1950 = scalar_select %p1888, %s1886, %s1949
    %p1951 = scmp.eq.s32.totalorder %s1944, 1
    %p1952 = por %p1888, %p1951
    %s1953 = scalar_select %p1888, %s1889, %s1944
    %v1954 = vstv %s1953
    %vm1955 = vcmp.eq.s32.totalorder %v1688, %v1954
    %vm1956 = vcmp.eq.s32.totalorder %v1689, %v1954
    %vm1957 = vcmp.eq.s32.totalorder %v1690, %v1954
    %vm1958 = vcmp.eq.s32.totalorder %v1691, %v1954
    %vm1959 = vcmp.eq.s32.totalorder %v1692, %v1954
    %vm1960 = vcmp.eq.s32.totalorder %v1693, %v1954
    %vm1961 = vcmp.eq.s32.totalorder %v1694, %v1954
    %vm1962 = vcmp.eq.s32.totalorder %v1695, %v1954
    %vm1963 = vcmp.eq.s32.totalorder %v1696, %v1954
    %vm1964 = vcmp.eq.s32.totalorder %v1697, %v1954
    %vm1965 = vcmp.eq.s32.totalorder %v1698, %v1954
    %vm1966 = vcmp.eq.s32.totalorder %v1699, %v1954
    %vm1967 = vcmp.eq.s32.totalorder %v1700, %v1954
    %vm1968 = vcmp.eq.s32.totalorder %v1701, %v1954
    %vm1969 = vcmp.eq.s32.totalorder %v1702, %v1954
    %vm1970 = vcmp.eq.s32.totalorder %v1703, %v1954
    %v1971 = vsel %vm1955, %v1476, 0
    %v1972 = vsel %vm1956, %v1490, 0
    %v1973 = vsel %vm1957, %v1504, 0
    %v1974 = vsel %vm1958, %v1518, 0
    %v1975 = vsel %vm1959, %v1532, 0
    %v1976 = vsel %vm1960, %v1546, 0
    %v1977 = vsel %vm1961, %v1560, 0
    %v1978 = vsel %vm1962, %v1574, 0
    %v1979 = vsel %vm1963, %v1588, 0
    %v1980 = vsel %vm1964, %v1602, 0
    %v1981 = vsel %vm1965, %v1616, 0
    %v1982 = vsel %vm1966, %v1630, 0
    %v1983 = vsel %vm1967, %v1644, 0
    %v1984 = vsel %vm1968, %v1658, 0
    %v1985 = vsel %vm1969, %v1672, 0
    %v1986 = vsel %vm1970, %v1686, 0
    %v1987 = vadd.s32 %v1971, %v1975
    %v1988 = vadd.s32 %v1972, %v1976
    %v1989 = vadd.s32 %v1973, %v1977
    %v1990 = vadd.s32 %v1974, %v1978
    %v1991 = vadd.s32 %v1987, %v1979
    %v1992 = vadd.s32 %v1988, %v1980
    %v1993 = vadd.s32 %v1989, %v1981
    %v1994 = vadd.s32 %v1990, %v1982
    %v1995 = vadd.s32 %v1991, %v1983
    %v1996 = vadd.s32 %v1992, %v1984
    %v1997 = vadd.s32 %v1993, %v1985
    %v1998 = vadd.s32 %v1994, %v1986
    %v1999 = vadd.s32 %v1995, %v1996
    %v2000 = vadd.s32 %v1997, %v1998
    %v2001 = vadd.s32 %v1999, %v2000
    %v2002 = vrot.slane %v2001, 4
    %v2003 = vadd.s32 %v2001, %v2002
    %v2004 = vrot.slane %v2003, 2
    %v2005 = vadd.s32 %v2003, %v2004
    %v2006 = vrot.slane %v2005, 1
    %v2007 = vadd.s32 %v2005, %v2006
    %s2008 = vtos %v2007
    %s2009 = scalar_select %p1952, 0, %s2008
    %s2010 = scalar_lea.smem [#allocation21], 5
    %2011 = sst [smem:[%s2010]] %s2009
    %s2012 = scalar_select %p1952, %s1948, %s1953
    %s2013 = sadd.s32 %s1950, 1
    %s2014 = scalar_select %p1952, %s1950, %s2013
    %p2015 = scmp.eq.s32.totalorder %s2008, 1
    %p2016 = por %p1952, %p2015
    %s2017 = scalar_select %p1952, %s1953, %s2008
    %v2018 = vstv %s2017
    %vm2019 = vcmp.eq.s32.totalorder %v1688, %v2018
    %vm2020 = vcmp.eq.s32.totalorder %v1689, %v2018
    %vm2021 = vcmp.eq.s32.totalorder %v1690, %v2018
    %vm2022 = vcmp.eq.s32.totalorder %v1691, %v2018
    %vm2023 = vcmp.eq.s32.totalorder %v1692, %v2018
    %vm2024 = vcmp.eq.s32.totalorder %v1693, %v2018
    %vm2025 = vcmp.eq.s32.totalorder %v1694, %v2018
    %vm2026 = vcmp.eq.s32.totalorder %v1695, %v2018
    %vm2027 = vcmp.eq.s32.totalorder %v1696, %v2018
    %vm2028 = vcmp.eq.s32.totalorder %v1697, %v2018
    %vm2029 = vcmp.eq.s32.totalorder %v1698, %v2018
    %vm2030 = vcmp.eq.s32.totalorder %v1699, %v2018
    %vm2031 = vcmp.eq.s32.totalorder %v1700, %v2018
    %vm2032 = vcmp.eq.s32.totalorder %v1701, %v2018
    %vm2033 = vcmp.eq.s32.totalorder %v1702, %v2018
    %vm2034 = vcmp.eq.s32.totalorder %v1703, %v2018
    %v2035 = vsel %vm2019, %v1476, 0
    %v2036 = vsel %vm2020, %v1490, 0
    %v2037 = vsel %vm2021, %v1504, 0
    %v2038 = vsel %vm2022, %v1518, 0
    %v2039 = vsel %vm2023, %v1532, 0
    %v2040 = vsel %vm2024, %v1546, 0
    %v2041 = vsel %vm2025, %v1560, 0
    %v2042 = vsel %vm2026, %v1574, 0
    %v2043 = vsel %vm2027, %v1588, 0
    %v2044 = vsel %vm2028, %v1602, 0
    %v2045 = vsel %vm2029, %v1616, 0
    %v2046 = vsel %vm2030, %v1630, 0
    %v2047 = vsel %vm2031, %v1644, 0
    %v2048 = vsel %vm2032, %v1658, 0
    %v2049 = vsel %vm2033, %v1672, 0
    %v2050 = vsel %vm2034, %v1686, 0
    %v2051 = vadd.s32 %v2035, %v2039
    %v2052 = vadd.s32 %v2036, %v2040
    %v2053 = vadd.s32 %v2037, %v2041
    %v2054 = vadd.s32 %v2038, %v2042
    %v2055 = vadd.s32 %v2051, %v2043
    %v2056 = vadd.s32 %v2052, %v2044
    %v2057 = vadd.s32 %v2053, %v2045
    %v2058 = vadd.s32 %v2054, %v2046
    %v2059 = vadd.s32 %v2055, %v2047
    %v2060 = vadd.s32 %v2056, %v2048
    %v2061 = vadd.s32 %v2057, %v2049
    %v2062 = vadd.s32 %v2058, %v2050
    %v2063 = vadd.s32 %v2059, %v2060
    %v2064 = vadd.s32 %v2061, %v2062
    %v2065 = vadd.s32 %v2063, %v2064
    %v2066 = vrot.slane %v2065, 4
    %v2067 = vadd.s32 %v2065, %v2066
    %v2068 = vrot.slane %v2067, 2
    %v2069 = vadd.s32 %v2067, %v2068
    %v2070 = vrot.slane %v2069, 1
    %v2071 = vadd.s32 %v2069, %v2070
    %s2072 = vtos %v2071
    %s2073 = scalar_select %p2016, 0, %s2072
    %s2074 = scalar_lea.smem [#allocation21], 6
    %2075 = sst [smem:[%s2074]] %s2073
    %s2076 = scalar_select %p2016, %s2012, %s2017
    %s2077 = sadd.s32 %s2014, 1
    %s2078 = scalar_select %p2016, %s2014, %s2077
    %p2079 = scmp.eq.s32.totalorder %s2072, 1
    %p2080 = por %p2016, %p2079
    %s2081 = scalar_select %p2016, %s2017, %s2072
    %v2082 = vstv %s2081
    %vm2083 = vcmp.eq.s32.totalorder %v1688, %v2082
    %vm2084 = vcmp.eq.s32.totalorder %v1689, %v2082
    %vm2085 = vcmp.eq.s32.totalorder %v1690, %v2082
    %vm2086 = vcmp.eq.s32.totalorder %v1691, %v2082
    %vm2087 = vcmp.eq.s32.totalorder %v1692, %v2082
    %vm2088 = vcmp.eq.s32.totalorder %v1693, %v2082
    %vm2089 = vcmp.eq.s32.totalorder %v1694, %v2082
    %vm2090 = vcmp.eq.s32.totalorder %v1695, %v2082
    %vm2091 = vcmp.eq.s32.totalorder %v1696, %v2082
    %vm2092 = vcmp.eq.s32.totalorder %v1697, %v2082
    %vm2093 = vcmp.eq.s32.totalorder %v1698, %v2082
    %vm2094 = vcmp.eq.s32.totalorder %v1699, %v2082
    %vm2095 = vcmp.eq.s32.totalorder %v1700, %v2082
    %vm2096 = vcmp.eq.s32.totalorder %v1701, %v2082
    %vm2097 = vcmp.eq.s32.totalorder %v1702, %v2082
    %vm2098 = vcmp.eq.s32.totalorder %v1703, %v2082
    %v2099 = vsel %vm2083, %v1476, 0
    %v2100 = vsel %vm2084, %v1490, 0
    %v2101 = vsel %vm2085, %v1504, 0
    %v2102 = vsel %vm2086, %v1518, 0
    %v2103 = vsel %vm2087, %v1532, 0
    %v2104 = vsel %vm2088, %v1546, 0
    %v2105 = vsel %vm2089, %v1560, 0
    %v2106 = vsel %vm2090, %v1574, 0
    %v2107 = vsel %vm2091, %v1588, 0
    %v2108 = vsel %vm2092, %v1602, 0
    %v2109 = vsel %vm2093, %v1616, 0
    %v2110 = vsel %vm2094, %v1630, 0
    %v2111 = vsel %vm2095, %v1644, 0
    %v2112 = vsel %vm2096, %v1658, 0
    %v2113 = vsel %vm2097, %v1672, 0
    %v2114 = vsel %vm2098, %v1686, 0
    %v2115 = vadd.s32 %v2099, %v2103
    %v2116 = vadd.s32 %v2100, %v2104
    %v2117 = vadd.s32 %v2101, %v2105
    %v2118 = vadd.s32 %v2102, %v2106
    %v2119 = vadd.s32 %v2115, %v2107
    %v2120 = vadd.s32 %v2116, %v2108
    %v2121 = vadd.s32 %v2117, %v2109
    %v2122 = vadd.s32 %v2118, %v2110
    %v2123 = vadd.s32 %v2119, %v2111
    %v2124 = vadd.s32 %v2120, %v2112
    %v2125 = vadd.s32 %v2121, %v2113
    %v2126 = vadd.s32 %v2122, %v2114
    %v2127 = vadd.s32 %v2123, %v2124
    %v2128 = vadd.s32 %v2125, %v2126
    %v2129 = vadd.s32 %v2127, %v2128
    %v2130 = vrot.slane %v2129, 4
    %v2131 = vadd.s32 %v2129, %v2130
    %v2132 = vrot.slane %v2131, 2
    %v2133 = vadd.s32 %v2131, %v2132
    %v2134 = vrot.slane %v2133, 1
    %v2135 = vadd.s32 %v2133, %v2134
    %s2136 = vtos %v2135
    %s2137 = scalar_select %p2080, 0, %s2136
    %s2138 = scalar_lea.smem [#allocation21], 7
    %2139 = sst [smem:[%s2138]] %s2137
    %s2140 = scalar_select %p2080, %s2076, %s2081
    %s2141 = sadd.s32 %s2078, 1
    %s2142 = scalar_select %p2080, %s2078, %s2141
    %v2143 = vstv %s2140
    %vm2144 = vcmp.eq.s32.totalorder %v1398, %v2143
    %v2145 = vsel %vm2144, 1, 0
    %v2146 = vcvt.s32.f32 %v2145
    %2163 = vmatprep.subr.mxu0 0.0
    %2164 = vmatpush1.msra.mxu0 %v1189
    %2165 = vmatprep.subr.mxu0 0.0
    %2166 = vmatpush1.msra.mxu0 %v1191
    %2167 = vmatprep.subr.mxu0 0.0
    %2168 = vmatpush1.msra.mxu0 %v1193
    %2169 = vmatprep.subr.mxu0 0.0
    %2170 = vmatpush1.msra.mxu0 %v1195
    %2171 = vmatprep.subr.mxu0 0.0
    %2172 = vmatpush1.msra.mxu0 %v1197
    %2173 = vmatprep.subr.mxu0 0.0
    %2174 = vmatpush1.msra.mxu0 %v1199
    %2175 = vmatprep.subr.mxu0 0.0
    %2176 = vmatpush1.msra.mxu0 %v1201
    %2177 = vmatprep.subr.mxu0 0.0
    %2178 = vmatpush1.msra.mxu0 %v1203
    %2179 = vmatprep.subr.mxu0 0.0
    %2180 = vmatpush1.msra.mxu0 %v1205
    %2181 = vmatprep.subr.mxu0 0.0
    %2182 = vmatpush1.msra.mxu0 %v1207
    %2183 = vmatprep.subr.mxu0 0.0
    %2184 = vmatpush1.msra.mxu0 %v1209
    %2185 = vmatprep.subr.mxu0 0.0
    %2186 = vmatpush1.msra.mxu0 %v1211
    %2187 = vmatprep.subr.mxu0 0.0
    %2188 = vmatpush1.msra.mxu0 %v1213
    %2189 = vmatprep.subr.mxu0 0.0
    %2190 = vmatpush1.msra.mxu0 %v1215
    %2191 = vmatprep.subr.mxu0 0.0
    %2192 = vmatpush1.msra.mxu0 %v1217
    %2193 = vmatprep.subr.mxu0 0.0
    %2194 = vmatpush1.msra.mxu0 %v1219
    %2195 = vmatprep.subr.mxu0 0.0
    %2196 = vmatpush1.msra.mxu0 0.0
    %2197 = vmatprep.subr.mxu0 0.0
    %2198 = vmatpush1.msra.mxu0 0.0
    %2199 = vmatprep.subr.mxu0 0.0
    %2200 = vmatpush1.msra.mxu0 0.0
    %2201 = vmatprep.subr.mxu0 0.0
    %2202 = vmatpush1.msra.mxu0 0.0
    %2203 = vmatprep.subr.mxu0 0.0
    %2204 = vmatpush1.msra.mxu0 0.0
    %2205 = vmatprep.subr.mxu0 0.0
    %2206 = vmatpush1.msra.mxu0 0.0
    %2207 = vmatprep.subr.mxu0 0.0
    %2208 = vmatpush1.msra.mxu0 0.0
    %2209 = vmatprep.subr.mxu0 0.0
    %2210 = vmatpush1.msra.mxu0 0.0
    %2211 = vmatprep.subr.mxu0 0.0
    %2212 = vmatpush1.msra.mxu0 0.0
    %2213 = vmatprep.subr.mxu0 0.0
    %2214 = vmatpush1.msra.mxu0 0.0
    %2215 = vmatprep.subr.mxu0 0.0
    %2216 = vmatpush1.msra.mxu0 0.0
    %2217 = vmatprep.subr.mxu0 0.0
    %2218 = vmatpush1.msra.mxu0 0.0
    %2219 = vmatprep.subr.mxu0 0.0
    %2220 = vmatpush1.msra.mxu0 0.0
    %2221 = vmatprep.subr.mxu0 0.0
    %2222 = vmatpush1.msra.mxu0 0.0
    %2223 = vmatprep.subr.mxu0 0.0
    %2224 = vmatpush1.msra.mxu0 0.0
    %2225 = vmatprep.subr.mxu0 0.0
    %2226 = vmatpush1.msra.mxu0 0.0
    %2227 = vmatprep.mubr.f32.mxu0 0.0
    %2228 = vmatmul.mubr.f32.gmra.mrb[0].mxu0 %v2146
    %v2229 = vpop.f32.mrb[0].mxu0
    %v2230 = vadd.f32 0.0, %v2229
    %v2231 = vpop.f32.mrb[0].mxu0
    %2232 = vdwg.mxu0
    %vm2233 = vcmask 253952
    %2234 = vst.msk [vmem:[#allocation19] sm:$0x1] %vm2233, %v2230
    %s2235 = scalar_lea.smem [#allocation22], 0
    %2236 = sst [smem:[%s2235]] %s2142
    // Predicated region
    $region98: #{decoder_forward.1} parent=1 // pred_check
      _
    $region99: #{decoder_forward.1} parent=1 // pred_check_branch
      %2238 = sbr.rel (0) target = $region101
    $region100: #{decoder_forward.1} parent=1 // pred_region
      %s2240 = ssub.s32 16, 16
      %2241 = vsyncadd [#allocation4], %s2240
      %s2243 = sshll.u32 [#allocation18], 4
      %s2244 = int_to_ptr.vmem [resolvable:$true] %s2243
      %2246 = dma.vmem_to_hbm [thread:$0]  %s2244, 16, %s15, [#allocation4]
    $region101: #{decoder_forward.1} parent=1 // pred_fallthru
      _
    // Predicated region
    $region102: #{decoder_forward.1} parent=1 // pred_check
      _
    $region103: #{decoder_forward.1} parent=1 // pred_check_branch
      %2248 = sbr.rel (0) target = $region105
    $region104: #{decoder_forward.1} parent=1 // pred_region
      %s2250 = ssub.s32 16, 16
      %2251 = vsyncadd [#allocation20], %s2250
      %s2253 = sshll.u32 [#allocation19], 4
      %s2254 = int_to_ptr.vmem [resolvable:$true] %s2253
      %2256 = dma.vmem_to_hbm [thread:$0]  %s2254, 16, %s16, [#allocation20]
    $region105: #{decoder_forward.1} parent=1 // pred_fallthru
      _
    // Predicated region
    $region106: #{decoder_forward.1} parent=1 // pred_check
      _
    $region107: #{decoder_forward.1} parent=1 // pred_check_branch
      %2258 = sbr.rel (0) target = $region109
    $region108: #{decoder_forward.1} parent=1 // pred_region
      %s2260 = ssub.s32 16, 16
      %2261 = vsyncadd [#allocation5], %s2260
      %2264 = dma.smem_to_hbm [#allocation21], 16, %s17, [#allocation5]
    $region109: #{decoder_forward.1} parent=1 // pred_fallthru
      _
    // Predicated region
    $region110: #{decoder_forward.1} parent=1 // pred_check
      _
    $region111: #{decoder_forward.1} parent=1 // pred_check_branch
      %2266 = sbr.rel (0) target = $region113
    $region112: #{decoder_forward.1} parent=1 // pred_region
      %s2268 = ssub.s32 16, 16
      %2269 = vsyncadd [#allocation23], %s2268
      %2272 = dma.smem_to_hbm [#allocation22], 16, %s18, [#allocation23]
    $region113: #{decoder_forward.1} parent=1 // pred_fallthru
      _
    // Predicated region
    $region114: #{decoder_forward.1} parent=1 // pred_check
      _
    $region115: #{decoder_forward.1} parent=1 // pred_check_branch
      %2274 = sbr.rel (0) target = $region117
    $region116: #{decoder_forward.1} parent=1 // pred_region
      %2275 = dma.done [#allocation4], 16
    $region117: #{decoder_forward.1} parent=1 // pred_fallthru
      _
    // Predicated region
    $region118: #{decoder_forward.1} parent=1 // pred_check
      _
    $region119: #{decoder_forward.1} parent=1 // pred_check_branch
      %2277 = sbr.rel (0) target = $region121
    $region120: #{decoder_forward.1} parent=1 // pred_region
      %2278 = dma.done [#allocation20], 16
    $region121: #{decoder_forward.1} parent=1 // pred_fallthru
      _
    // Predicated region
    $region122: #{decoder_forward.1} parent=1 // pred_check
      _
    $region123: #{decoder_forward.1} parent=1 // pred_check_branch
      %2280 = sbr.rel (0) target = $region125
    $region124: #{decoder_forward.1} parent=1 // pred_region
      %2281 = dma.done [#allocation5], 16
    $region125: #{decoder_forward.1} parent=1 // pred_fallthru
      _
    // Predicated region
    $region126: #{decoder_forward.1} parent=1 // pred_check
      _
    $region127: #{decoder_forward.1} parent=1 // pred_check_branch
      %2283 = sbr.rel (0) target = $region129
    $region128: #{decoder_forward.1} parent=1 // pred_region
      %2284 = dma.done [#allocation23], 16
    $region129: #{decoder_forward.1} parent=1 // pred_fallthru
      _
    %2285 = sfence
    %2286 = vsyncpa [#allocation3], 1
    %2287 = vsyncpa [#allocation7], 1
    %2288 = vsyncpa [#allocation10], 1
    %2289 = vsyncpa [#allocation13], 1
    %2290 = vsyncpa [#allocation16], 1
    %2291 = vsyncpa [#allocation4], 1
    %2292 = vsyncpa [#allocation20], 1
    %2293 = vsyncpa [#allocation5], 1
    %2294 = vsyncpa [#allocation23], 1

</llo_original>
